<compile_context>
chip_gen: v6e
topology: v6e:2x2x1
jax: 0.10.0
libtpu: 0.0.40
codegen_flags: <defaults>
</compile_context>

<pallas_src>
import jax
import jax.numpy as jnp
from jax.experimental import pallas as pl
from jax.experimental.pallas import tpu as pltpu

D_HDIM = 512


def _round_up(n, m):
    return ((n + m - 1) // m) * m


def _leaky_relu(x, slope=0.2):
    return jnp.where(x > 0, x, slope * x)


def discriminator_kernel(x_ref,
                         w1_ref, b1_ref,
                         w2_ref, b2_ref,
                         w3_ref, b3_ref,
                         w4_ref, b4_ref,
                         out_ref):
    # x tile: (TB, input_dim) bf16; weights bf16; biases / w4 row f32.
    x = x_ref[...]

    h = jnp.dot(x, w1_ref[...], preferred_element_type=jnp.float32) + b1_ref[...]
    h = _leaky_relu(h)

    h = jnp.dot(h.astype(jnp.bfloat16), w2_ref[...],
                preferred_element_type=jnp.float32) + b2_ref[...]
    h = _leaky_relu(h)

    h = jnp.dot(h.astype(jnp.bfloat16), w3_ref[...],
                preferred_element_type=jnp.float32) + b3_ref[...]
    h = _leaky_relu(h)

    # Final layer has N=1: do it as a VPU multiply + XLU lane reduction
    # instead of a (TB, 512) x (512, 1) matmul that pads the MXU to 128 lanes.
    logit = jnp.sum(h * w4_ref[...], axis=-1, keepdims=True) + b4_ref[...]
    out_ref[...] = jax.nn.sigmoid(logit)


def discriminator_forward(x, params, *, tile_b=256):
    """x: (B, ...) -> flattened to (B, input_dim), like the PyTorch module."""
    B = x.shape[0]
    x2d = x.reshape(B, -1)
    input_dim = x2d.shape[1]

    (w1, b1), (w2, b2), (w3, b3), (w4, b4) = params

    # bf16 operands for the MXU; final-layer weight as a (1, hdim) f32 row.
    w1b = w1.astype(jnp.bfloat16)
    w2b = w2.astype(jnp.bfloat16)
    w3b = w3.astype(jnp.bfloat16)
    b1f = b1.astype(jnp.float32)
    b2f = b2.astype(jnp.float32)
    b3f = b3.astype(jnp.float32)
    w4_row = w4.reshape(1, -1).astype(jnp.float32)   # (1, D_HDIM)
    b4_2d = b4.reshape(1, 1).astype(jnp.float32)

    # Batch tile: multiple of 8 sublanes, capped at tile_b; pad B up to it.
    TB = tile_b if B >= tile_b else _round_up(B, 8)
    B_pad = _round_up(B, TB)
    xb = x2d.astype(jnp.bfloat16)
    if B_pad != B:
        xb = jnp.pad(xb, ((0, B_pad - B), (0, 0)))

    grid = (B_pad // TB,)

    def resident(arr):
        ndim = arr.ndim
        return pl.BlockSpec(arr.shape, lambda i, _n=ndim: (0,) * _n)

    # Explicit VMEM budget: resident weights + double-buffered x/out tiles.
    weight_bytes = ((w1b.size + w2b.size + w3b.size) * 2 +
                    (b1f.size + b2f.size + b3f.size +
                     w4_row.size + b4_2d.size) * 4)
    io_bytes = 2 * (TB * input_dim * 2) + 2 * (TB * 1 * 4)
    vmem_limit = int(min(96 << 20, max(16 << 20, 2 * (weight_bytes + io_bytes))))

    out = pl.pallas_call(
        discriminator_kernel,
        out_shape=jax.ShapeDtypeStruct((B_pad, 1), jnp.float32),
        grid=grid,
        in_specs=[
            pl.BlockSpec((TB, input_dim), lambda i: (i, 0)),
            resident(w1b), resident(b1f),
            resident(w2b), resident(b2f),
            resident(w3b), resident(b3f),
            resident(w4_row), resident(b4_2d),
        ],
        out_specs=pl.BlockSpec((TB, 1), lambda i: (i, 0)),
        compiler_params=pltpu.CompilerParams(
            dimension_semantics=("parallel",),
            vmem_limit_bytes=vmem_limit),
    )(xb, w1b, b1f, w2b, b2f, w3b, b3f, w4_row, b4_2d)

    return out[:B]


def init_params(key, input_dim, hdim=D_HDIM):
    """Deterministic synthetic init (roughly matching nn.Linear's uniform init).

    Weights stored as (in, out) so the kernel computes h = x @ W + b directly.
    """
    dims = [(input_dim, hdim), (hdim, hdim), (hdim, hdim), (hdim, 1)]
    params = []
    for (fan_in, fan_out) in dims:
        key, kw, kb = jax.random.split(key, 3)
        bound = 1.0 / jnp.sqrt(fan_in)
        w = jax.random.uniform(kw, (fan_in, fan_out), jnp.float32, -bound, bound)
        b = jax.random.uniform(kb, (1, fan_out), jnp.float32, -bound, bound)
        params.append((w, b))
    return params


def reference_forward(x, params):
    """Pure-JAX f32 reference matching the PyTorch module semantics."""
    B = x.shape[0]
    h = x.reshape(B, -1).astype(jnp.float32)
    (w1, b1), (w2, b2), (w3, b3), (w4, b4) = params
    h = _leaky_relu(h @ w1 + b1)
    h = _leaky_relu(h @ w2 + b2)
    h = _leaky_relu(h @ w3 + b3)
    return jax.nn.sigmoid(h @ w4 + b4)


if __name__ == "__main__":
    key = jax.random.PRNGKey(0)
    k_x, k_p = jax.random.split(key)

    # x is (B, seq, feat) -> flattened to (B, seq*feat) inside forward.
    B, SEQ, FEAT = 2, 8, 32
    input_dim = SEQ * FEAT
    x = jax.random.normal(k_x, (B, SEQ, FEAT), dtype=jnp.float32)

    params = init_params(k_p, input_dim)

    out = discriminator_forward(x, params)
    out = jax.block_until_ready(out)

    ref = reference_forward(x, params)
    assert out.shape == (B, 1)
    # bf16 matmul operands (f32 accumulation) vs f32 reference -> loose tol.
    assert jnp.allclose(out, ref, atol=2e-2, rtol=2e-2), (
        f"max abs diff = {jnp.max(jnp.abs(out - ref))}")

    print("KERNEL_OK")
</pallas_src>

<mosaic_0001>
module attributes {stable_mosaic.version = 11 : i64} {
  func.func @discriminator_kernel(%arg0: i32, %arg1: memref<8x256xbf16, #tpu.memory_space<vmem>>, %arg2: memref<256x512xbf16, #tpu.memory_space<vmem>>, %arg3: memref<1x512xf32, #tpu.memory_space<vmem>>, %arg4: memref<512x512xbf16, #tpu.memory_space<vmem>>, %arg5: memref<1x512xf32, #tpu.memory_space<vmem>>, %arg6: memref<512x512xbf16, #tpu.memory_space<vmem>>, %arg7: memref<1x512xf32, #tpu.memory_space<vmem>>, %arg8: memref<1x512xf32, #tpu.memory_space<vmem>>, %arg9: memref<1x1xf32, #tpu.memory_space<vmem>>, %arg10: memref<8x1xf32, #tpu.memory_space<vmem>>) attributes {dimension_semantics = [#tpu.dimension_semantics<parallel>], iteration_bounds = array<i64: 1>, scalar_prefetch = 0 : i64, scratch_operands = 0 : i64, tpu.core_type = #tpu.core_type<tc>, window_params = [{transform_indices = @transform_0, window_bounds = array<i64: 8, 256>}, {pipeline_mode = #tpu.pipeline_mode<synchronous>, transform_indices = @transform_1, window_bounds = array<i64: 256, 512>}, {pipeline_mode = #tpu.pipeline_mode<synchronous>, transform_indices = @transform_2, window_bounds = array<i64: 1, 512>}, {pipeline_mode = #tpu.pipeline_mode<synchronous>, transform_indices = @transform_3, window_bounds = array<i64: 512, 512>}, {pipeline_mode = #tpu.pipeline_mode<synchronous>, transform_indices = @transform_4, window_bounds = array<i64: 1, 512>}, {pipeline_mode = #tpu.pipeline_mode<synchronous>, transform_indices = @transform_5, window_bounds = array<i64: 512, 512>}, {pipeline_mode = #tpu.pipeline_mode<synchronous>, transform_indices = @transform_6, window_bounds = array<i64: 1, 512>}, {pipeline_mode = #tpu.pipeline_mode<synchronous>, transform_indices = @transform_7, window_bounds = array<i64: 1, 512>}, {pipeline_mode = #tpu.pipeline_mode<synchronous>, transform_indices = @transform_8, window_bounds = array<i64: 1, 1>}, {transform_indices = @transform_9, window_bounds = array<i64: 8, 1>}]} {
    %c0 = arith.constant 0 : index
    %c0_0 = arith.constant 0 : index
    %0 = vector.load %arg1[%c0, %c0_0] : memref<8x256xbf16, #tpu.memory_space<vmem>>, vector<8x256xbf16>
    %c0_1 = arith.constant 0 : index
    %c0_2 = arith.constant 0 : index
    %1 = vector.load %arg2[%c0_1, %c0_2] : memref<256x512xbf16, #tpu.memory_space<vmem>>, vector<256x512xbf16>
    %cst = arith.constant dense<0.000000e+00> : vector<8x512xf32>
    %2 = tpu.matmul %0, %1, %cst {dimension_numbers = #tpu.dot_dimension_numbers<[1], [0], [0], [1], [0, 0, 1, 1], [], []>} : vector<8x256xbf16>, vector<256x512xbf16>, vector<8x512xf32> -> vector<8x512xf32>
    %c0_3 = arith.constant 0 : index
    %c0_4 = arith.constant 0 : index
    %3 = vector.load %arg3[%c0_3, %c0_4] : memref<1x512xf32, #tpu.memory_space<vmem>>, vector<1x512xf32>
    %4 = vector.broadcast %3 : vector<1x512xf32> to vector<8x512xf32>
    %5 = arith.addf %2, %4 : vector<8x512xf32>
    %cst_5 = arith.constant 0.000000e+00 : f32
    %6 = vector.broadcast %cst_5 : f32 to vector<8x512xf32>
    %7 = arith.cmpf ogt, %5, %6 : vector<8x512xf32>
    %cst_6 = arith.constant 2.000000e-01 : f32
    %8 = vector.broadcast %cst_6 : f32 to vector<8x512xf32>
    %9 = arith.mulf %8, %5 : vector<8x512xf32>
    %10 = arith.select %7, %5, %9 : vector<8x512xi1>, vector<8x512xf32>
    %11 = arith.truncf %10 : vector<8x512xf32> to vector<8x512xbf16>
    %c0_7 = arith.constant 0 : index
    %c0_8 = arith.constant 0 : index
    %12 = vector.load %arg4[%c0_7, %c0_8] : memref<512x512xbf16, #tpu.memory_space<vmem>>, vector<512x512xbf16>
    %cst_9 = arith.constant dense<0.000000e+00> : vector<8x512xf32>
    %13 = tpu.matmul %11, %12, %cst_9 {dimension_numbers = #tpu.dot_dimension_numbers<[1], [0], [0], [1], [0, 0, 1, 1], [], []>} : vector<8x512xbf16>, vector<512x512xbf16>, vector<8x512xf32> -> vector<8x512xf32>
    %c0_10 = arith.constant 0 : index
    %c0_11 = arith.constant 0 : index
    %14 = vector.load %arg5[%c0_10, %c0_11] : memref<1x512xf32, #tpu.memory_space<vmem>>, vector<1x512xf32>
    %15 = vector.broadcast %14 : vector<1x512xf32> to vector<8x512xf32>
    %16 = arith.addf %13, %15 : vector<8x512xf32>
    %cst_12 = arith.constant 0.000000e+00 : f32
    %17 = vector.broadcast %cst_12 : f32 to vector<8x512xf32>
    %18 = arith.cmpf ogt, %16, %17 : vector<8x512xf32>
    %cst_13 = arith.constant 2.000000e-01 : f32
    %19 = vector.broadcast %cst_13 : f32 to vector<8x512xf32>
    %20 = arith.mulf %19, %16 : vector<8x512xf32>
    %21 = arith.select %18, %16, %20 : vector<8x512xi1>, vector<8x512xf32>
    %22 = arith.truncf %21 : vector<8x512xf32> to vector<8x512xbf16>
    %c0_14 = arith.constant 0 : index
    %c0_15 = arith.constant 0 : index
    %23 = vector.load %arg6[%c0_14, %c0_15] : memref<512x512xbf16, #tpu.memory_space<vmem>>, vector<512x512xbf16>
    %cst_16 = arith.constant dense<0.000000e+00> : vector<8x512xf32>
    %24 = tpu.matmul %22, %23, %cst_16 {dimension_numbers = #tpu.dot_dimension_numbers<[1], [0], [0], [1], [0, 0, 1, 1], [], []>} : vector<8x512xbf16>, vector<512x512xbf16>, vector<8x512xf32> -> vector<8x512xf32>
    %c0_17 = arith.constant 0 : index
    %c0_18 = arith.constant 0 : index
    %25 = vector.load %arg7[%c0_17, %c0_18] : memref<1x512xf32, #tpu.memory_space<vmem>>, vector<1x512xf32>
    %26 = vector.broadcast %25 : vector<1x512xf32> to vector<8x512xf32>
    %27 = arith.addf %24, %26 : vector<8x512xf32>
    %cst_19 = arith.constant 0.000000e+00 : f32
    %28 = vector.broadcast %cst_19 : f32 to vector<8x512xf32>
    %29 = arith.cmpf ogt, %27, %28 : vector<8x512xf32>
    %cst_20 = arith.constant 2.000000e-01 : f32
    %30 = vector.broadcast %cst_20 : f32 to vector<8x512xf32>
    %31 = arith.mulf %30, %27 : vector<8x512xf32>
    %32 = arith.select %29, %27, %31 : vector<8x512xi1>, vector<8x512xf32>
    %c0_21 = arith.constant 0 : index
    %c0_22 = arith.constant 0 : index
    %33 = vector.load %arg8[%c0_21, %c0_22] : memref<1x512xf32, #tpu.memory_space<vmem>>, vector<1x512xf32>
    %34 = vector.broadcast %33 : vector<1x512xf32> to vector<8x512xf32>
    %35 = arith.mulf %32, %34 : vector<8x512xf32>
    %cst_23 = arith.constant dense<0.000000e+00> : vector<8xf32>
    %36 = vector.multi_reduction <add>, %35, %cst_23 [1] : vector<8x512xf32> to vector<8xf32>
    %37 = vector.shape_cast %36 : vector<8xf32> to vector<8x1xf32>
    %c0_24 = arith.constant 0 : index
    %c0_25 = arith.constant 0 : index
    %38 = vector.load %arg9[%c0_24, %c0_25] : memref<1x1xf32, #tpu.memory_space<vmem>>, vector<1x1xf32>
    %39 = vector.broadcast %38 : vector<1x1xf32> to vector<8x1xf32>
    %40 = arith.addf %37, %39 : vector<8x1xf32>
    %41 = arith.negf %40 : vector<8x1xf32>
    %42 = math.exp %41 : vector<8x1xf32>
    %cst_26 = arith.constant 1.000000e+00 : f32
    %43 = vector.broadcast %cst_26 : f32 to vector<8x1xf32>
    %44 = arith.addf %43, %42 : vector<8x1xf32>
    %45 = arith.divf %43, %44 : vector<8x1xf32>
    %c0_27 = arith.constant 0 : index
    %c0_28 = arith.constant 0 : index
    %46 = vector.load %arg10[%c0_27, %c0_28] : memref<8x1xf32, #tpu.memory_space<vmem>>, vector<8x1xf32>
    tpu.vector_store %arg10[%c0_27, %c0_28], %45 {strides = array<i32>} : memref<8x1xf32, #tpu.memory_space<vmem>>, vector<8x1xf32>,
    return
  }
  func.func @transform_0(%arg0: i32) -> (i32, i32) {
    %c0_i32 = arith.constant 0 : i32
    %c0_i32_0 = arith.constant 0 : i32
    return %arg0, %c0_i32 : i32, i32
  }
  func.func @transform_1(%arg0: i32) -> (i32, i32) {
    %c0_i32 = arith.constant 0 : i32
    %c0_i32_0 = arith.constant 0 : i32
    %c0_i32_1 = arith.constant 0 : i32
    return %c0_i32, %c0_i32_0 : i32, i32
  }
  func.func @transform_2(%arg0: i32) -> (i32, i32) {
    %c0_i32 = arith.constant 0 : i32
    %c0_i32_0 = arith.constant 0 : i32
    %c0_i32_1 = arith.constant 0 : i32
    return %c0_i32, %c0_i32_0 : i32, i32
  }
  func.func @transform_3(%arg0: i32) -> (i32, i32) {
    %c0_i32 = arith.constant 0 : i32
    %c0_i32_0 = arith.constant 0 : i32
    %c0_i32_1 = arith.constant 0 : i32
    return %c0_i32, %c0_i32_0 : i32, i32
  }
  func.func @transform_4(%arg0: i32) -> (i32, i32) {
    %c0_i32 = arith.constant 0 : i32
    %c0_i32_0 = arith.constant 0 : i32
    %c0_i32_1 = arith.constant 0 : i32
    return %c0_i32, %c0_i32_0 : i32, i32
  }
  func.func @transform_5(%arg0: i32) -> (i32, i32) {
    %c0_i32 = arith.constant 0 : i32
    %c0_i32_0 = arith.constant 0 : i32
    %c0_i32_1 = arith.constant 0 : i32
    return %c0_i32, %c0_i32_0 : i32, i32
  }
  func.func @transform_6(%arg0: i32) -> (i32, i32) {
    %c0_i32 = arith.constant 0 : i32
    %c0_i32_0 = arith.constant 0 : i32
    %c0_i32_1 = arith.constant 0 : i32
    return %c0_i32, %c0_i32_0 : i32, i32
  }
  func.func @transform_7(%arg0: i32) -> (i32, i32) {
    %c0_i32 = arith.constant 0 : i32
    %c0_i32_0 = arith.constant 0 : i32
    %c0_i32_1 = arith.constant 0 : i32
    return %c0_i32, %c0_i32_0 : i32, i32
  }
  func.func @transform_8(%arg0: i32) -> (i32, i32) {
    %c0_i32 = arith.constant 0 : i32
    %c0_i32_0 = arith.constant 0 : i32
    %c0_i32_1 = arith.constant 0 : i32
    return %c0_i32, %c0_i32_0 : i32, i32
  }
  func.func @transform_9(%arg0: i32) -> (i32, i32) {
    %c0_i32 = arith.constant 0 : i32
    %c0_i32_0 = arith.constant 0 : i32
    return %arg0, %c0_i32 : i32, i32
  }
}

</mosaic_0001>

<llo_original>
// kernel: tpu_custom_call.1
$region0: #{tpu_custom_call.1}
  #allocation0 [shape = 'u32[]', space=smem, size = 0x4, offset = 0x4, fixed_abs, tag = 'smem constant byte address 0x4 - core index']
  #allocation1 [shape = 'u32[144,128]{1,0:T(1,128)}', space=vmem, size = 0x12000, scoped, tag = 'internal scratch']
  #allocation2 [shape = 'f32[1,1]{1,0:T(1,128)S(1)}', space=vmem, size = 0x200, scoped, tag = 'scoped memory for tpu_custom_call.1']
  %s0 = inlined_call_operand.hbm [shape: bf16[8,256], index: 0, kind: input, shape index: {}]
  %s1 = inlined_call_operand.hbm [shape: bf16[256,512], index: 1, kind: input, shape index: {}]
  %s2 = inlined_call_operand.vmem [shape: f32[1,512], index: 2, kind: input, shape index: {}]
  %s3 = inlined_call_operand.hbm [shape: bf16[512,512], index: 3, kind: input, shape index: {}]
  %s4 = inlined_call_operand.vmem [shape: f32[1,512], index: 4, kind: input, shape index: {}]
  %s5 = inlined_call_operand.hbm [shape: bf16[512,512], index: 5, kind: input, shape index: {}]
  %s6 = inlined_call_operand.vmem [shape: f32[1,512], index: 6, kind: input, shape index: {}]
  %s7 = inlined_call_operand.hbm [shape: f32[1,512], index: 7, kind: input, shape index: {}]
  %s8 = inlined_call_operand.<no memory space> [shape: f32[1,1], index: 8, kind: input, shape index: {}]
  %s9 = inlined_call_operand.vmem [shape: f32[8,1], index: 9, kind: output, shape index: {}]
  %s10 = sld [smem:[#allocation0]]
  $region66: #{tpu_custom_call.1} parent=0
    _
  %s12 = ssub.s32 1, %s10
  %s13 = scalar_select 0, %s12, %s10
  %v14 = vstv %s8
  %15 = vst [vmem:[#allocation2] sm:$0x1] %v14
  $region1: #{tpu_custom_call.1} parent=0
    #allocation3 [shape = 'u8[4096]{0}', space=vmem, size = 0x1000, scoped, tag = 'input window, operand 0, single buffered']
    #allocation4 [shape = 's32[1]{0}', space=sflag, size = 0x4, scoped, tag = 'scoped memory for tpu_custom_call.1']
    #allocation5 [shape = 'u8[262144]{0}', space=vmem, size = 0x40000, scoped, tag = 'input window, operand 1, single buffered']
    #allocation6 [shape = 's32[1]{0}', space=sflag, size = 0x4, scoped, tag = 'scoped memory for tpu_custom_call.1']
    #allocation7 [shape = 'u8[524288]{0}', space=vmem, size = 0x80000, scoped, tag = 'input window, operand 3, single buffered']
    #allocation8 [shape = 'u8[524288]{0}', space=vmem, size = 0x80000, scoped, tag = 'input window, operand 5, single buffered']
    #allocation9 [shape = 's32[1]{0}', space=sflag, size = 0x4, scoped, tag = 'scoped memory for tpu_custom_call.1']
    #allocation10 [shape = 'u8[2048]{0}', space=vmem, size = 0x800, scoped, tag = 'input window, operand 7, single buffered']
    %16 = vsyncpa [#allocation4], 0
    %17 = vsyncpa [#allocation6], 0
    %18 = vsyncpa [#allocation9], 0
    // Predicated region
    $region2: #{tpu_custom_call.1} parent=1 // pred_check
      _
    $region3: #{tpu_custom_call.1} parent=1 // pred_check_branch
      %20 = sbr.rel (0) target = $region5
    $region4: #{tpu_custom_call.1} parent=1 // pred_region
      %s22 = ssub.s32 128, 128
      %23 = vsyncadd [#allocation4], %s22
      %s25 = sshll.u32 [#allocation3], 4
      %s26 = int_to_ptr.vmem [resolvable:$true] %s25
      %28 = dma.hbm_to_vmem [thread:$0]  %s0, 128, %s26, [#allocation4]
    $region5: #{tpu_custom_call.1} parent=1 // pred_fallthru
      _
    // Predicated region
    $region6: #{tpu_custom_call.1} parent=1 // pred_check
      _
    $region7: #{tpu_custom_call.1} parent=1 // pred_check_branch
      %30 = sbr.rel (0) target = $region9
    $region8: #{tpu_custom_call.1} parent=1 // pred_region
      %s32 = ssub.s32 8192, 8192
      %33 = vsyncadd [#allocation6], %s32
      %s34 = sshll.u32 [#allocation5], 4
      %s35 = int_to_ptr.vmem [resolvable:$true] %s34
      %40 = dma.hbm_to_vmem [thread:$0]  %s1, 8192, %s35, [#allocation6], 256, 256, 16
    $region9: #{tpu_custom_call.1} parent=1 // pred_fallthru
      _
    // Predicated region
    $region10: #{tpu_custom_call.1} parent=1 // pred_check
      _
    $region11: #{tpu_custom_call.1} parent=1 // pred_check_branch
      %42 = sbr.rel (0) target = $region13
    $region12: #{tpu_custom_call.1} parent=1 // pred_region
      _
    $region13: #{tpu_custom_call.1} parent=1 // pred_fallthru
      _
    // Predicated region
    $region14: #{tpu_custom_call.1} parent=1 // pred_check
      _
    $region15: #{tpu_custom_call.1} parent=1 // pred_check_branch
      %44 = sbr.rel (0) target = $region17
    $region16: #{tpu_custom_call.1} parent=1 // pred_region
      %s46 = ssub.s32 16384, 16384
      %47 = vsyncadd [#allocation6], %s46
      %s48 = sshll.u32 [#allocation7], 4
      %s49 = int_to_ptr.vmem [resolvable:$true] %s48
      %54 = dma.hbm_to_vmem [thread:$0]  %s3, 16384, %s49, [#allocation6], 256, 256, 16
    $region17: #{tpu_custom_call.1} parent=1 // pred_fallthru
      _
    // Predicated region
    $region18: #{tpu_custom_call.1} parent=1 // pred_check
      _
    $region19: #{tpu_custom_call.1} parent=1 // pred_check_branch
      %56 = sbr.rel (0) target = $region21
    $region20: #{tpu_custom_call.1} parent=1 // pred_region
      _
    $region21: #{tpu_custom_call.1} parent=1 // pred_fallthru
      _
    // Predicated region
    $region22: #{tpu_custom_call.1} parent=1 // pred_check
      _
    $region23: #{tpu_custom_call.1} parent=1 // pred_check_branch
      %58 = sbr.rel (0) target = $region25
    $region24: #{tpu_custom_call.1} parent=1 // pred_region
      %s60 = ssub.s32 16384, 16384
      %61 = vsyncadd [#allocation9], %s60
      %s62 = sshll.u32 [#allocation8], 4
      %s63 = int_to_ptr.vmem [resolvable:$true] %s62
      %68 = dma.hbm_to_vmem [thread:$0]  %s5, 16384, %s63, [#allocation9], 256, 256, 16
    $region25: #{tpu_custom_call.1} parent=1 // pred_fallthru
      _
    // Predicated region
    $region26: #{tpu_custom_call.1} parent=1 // pred_check
      _
    $region27: #{tpu_custom_call.1} parent=1 // pred_check_branch
      %70 = sbr.rel (0) target = $region29
    $region28: #{tpu_custom_call.1} parent=1 // pred_region
      _
    $region29: #{tpu_custom_call.1} parent=1 // pred_fallthru
      _
    // Predicated region
    $region30: #{tpu_custom_call.1} parent=1 // pred_check
      _
    $region31: #{tpu_custom_call.1} parent=1 // pred_check_branch
      %72 = sbr.rel (0) target = $region33
    $region32: #{tpu_custom_call.1} parent=1 // pred_region
      %s74 = ssub.s32 64, 64
      %75 = vsyncadd [#allocation9], %s74
      %s77 = sshll.u32 [#allocation10], 4
      %s78 = int_to_ptr.vmem [resolvable:$true] %s77
      %80 = dma.hbm_to_vmem [thread:$0]  %s7, 64, %s78, [#allocation9]
    $region33: #{tpu_custom_call.1} parent=1 // pred_fallthru
      _
    // Predicated region
    $region34: #{tpu_custom_call.1} parent=1 // pred_check
      _
    $region35: #{tpu_custom_call.1} parent=1 // pred_check_branch
      %82 = sbr.rel (0) target = $region37
    $region36: #{tpu_custom_call.1} parent=1 // pred_region
      _
    $region37: #{tpu_custom_call.1} parent=1 // pred_fallthru
      _
    // Predicated region
    $region38: #{tpu_custom_call.1} parent=1 // pred_check
      _
    $region39: #{tpu_custom_call.1} parent=1 // pred_check_branch
      %84 = sbr.rel (0) target = $region41
    $region40: #{tpu_custom_call.1} parent=1 // pred_region
      %85 = dma.done [#allocation4], 128
    $region41: #{tpu_custom_call.1} parent=1 // pred_fallthru
      _
    // Predicated region
    $region42: #{tpu_custom_call.1} parent=1 // pred_check
      _
    $region43: #{tpu_custom_call.1} parent=1 // pred_check_branch
      %87 = sbr.rel (0) target = $region45
    $region44: #{tpu_custom_call.1} parent=1 // pred_region
      %88 = dma.done [#allocation6], 8192
    $region45: #{tpu_custom_call.1} parent=1 // pred_fallthru
      _
    // Predicated region
    $region46: #{tpu_custom_call.1} parent=1 // pred_check
      _
    $region47: #{tpu_custom_call.1} parent=1 // pred_check_branch
      %90 = sbr.rel (0) target = $region49
    $region48: #{tpu_custom_call.1} parent=1 // pred_region
      %91 = dma.done [#allocation6], 16384
    $region49: #{tpu_custom_call.1} parent=1 // pred_fallthru
      _
    // Predicated region
    $region50: #{tpu_custom_call.1} parent=1 // pred_check
      _
    $region51: #{tpu_custom_call.1} parent=1 // pred_check_branch
      %93 = sbr.rel (0) target = $region53
    $region52: #{tpu_custom_call.1} parent=1 // pred_region
      %94 = dma.done [#allocation9], 16384
    $region53: #{tpu_custom_call.1} parent=1 // pred_fallthru
      _
    // Predicated region
    $region54: #{tpu_custom_call.1} parent=1 // pred_check
      _
    $region55: #{tpu_custom_call.1} parent=1 // pred_check_branch
      %96 = sbr.rel (0) target = $region57
    $region56: #{tpu_custom_call.1} parent=1 // pred_region
      %97 = dma.done [#allocation9], 64
    $region57: #{tpu_custom_call.1} parent=1 // pred_fallthru
      _
    %v98 = vld [vmem:[#allocation3] sm:$0xff]
    %v99 = vld [vmem:[#allocation5] sm:$0xff]
    %v100 = vld [vmem:[#allocation5 + $0x8] sm:$0xff]
    %v101 = vld [vmem:[#allocation5 + $0x10] sm:$0xff]
    %v102 = vld [vmem:[#allocation5 + $0x18] sm:$0xff]
    %v103 = vld [vmem:[#allocation5 + $0x20] sm:$0xff]
    %v104 = vld [vmem:[#allocation5 + $0x28] sm:$0xff]
    %v105 = vld [vmem:[#allocation5 + $0x30] sm:$0xff]
    %v106 = vld [vmem:[#allocation5 + $0x38] sm:$0xff]
    %v107 = vld [vmem:[#allocation5 + $0x40] sm:$0xff]
    %v108 = vld [vmem:[#allocation5 + $0x48] sm:$0xff]
    %v109 = vld [vmem:[#allocation5 + $0x50] sm:$0xff]
    %v110 = vld [vmem:[#allocation5 + $0x58] sm:$0xff]
    %v111 = vld [vmem:[#allocation5 + $0x60] sm:$0xff]
    %v112 = vld [vmem:[#allocation5 + $0x68] sm:$0xff]
    %v113 = vld [vmem:[#allocation5 + $0x70] sm:$0xff]
    %v114 = vld [vmem:[#allocation5 + $0x78] sm:$0xff]
    %v115 = vld [vmem:[#allocation5 + $0x80] sm:$0xff]
    %v116 = vld [vmem:[#allocation5 + $0x88] sm:$0xff]
    %v117 = vld [vmem:[#allocation5 + $0x90] sm:$0xff]
    %v118 = vld [vmem:[#allocation5 + $0x98] sm:$0xff]
    %v119 = vld [vmem:[#allocation5 + $0xa0] sm:$0xff]
    %v120 = vld [vmem:[#allocation5 + $0xa8] sm:$0xff]
    %v121 = vld [vmem:[#allocation5 + $0xb0] sm:$0xff]
    %v122 = vld [vmem:[#allocation5 + $0xb8] sm:$0xff]
    %v123 = vld [vmem:[#allocation5 + $0xc0] sm:$0xff]
    %v124 = vld [vmem:[#allocation5 + $0xc8] sm:$0xff]
    %v125 = vld [vmem:[#allocation5 + $0xd0] sm:$0xff]
    %v126 = vld [vmem:[#allocation5 + $0xd8] sm:$0xff]
    %v127 = vld [vmem:[#allocation5 + $0xe0] sm:$0xff]
    %v128 = vld [vmem:[#allocation5 + $0xe8] sm:$0xff]
    %v129 = vld [vmem:[#allocation5 + $0xf0] sm:$0xff]
    %v130 = vld [vmem:[#allocation5 + $0xf8] sm:$0xff]
    %v131 = vld [vmem:[#allocation5 + $0x100] sm:$0xff]
    %v132 = vld [vmem:[#allocation5 + $0x108] sm:$0xff]
    %v133 = vld [vmem:[#allocation5 + $0x110] sm:$0xff]
    %v134 = vld [vmem:[#allocation5 + $0x118] sm:$0xff]
    %v135 = vld [vmem:[#allocation5 + $0x120] sm:$0xff]
    %v136 = vld [vmem:[#allocation5 + $0x128] sm:$0xff]
    %v137 = vld [vmem:[#allocation5 + $0x130] sm:$0xff]
    %v138 = vld [vmem:[#allocation5 + $0x138] sm:$0xff]
    %v139 = vld [vmem:[#allocation5 + $0x140] sm:$0xff]
    %v140 = vld [vmem:[#allocation5 + $0x148] sm:$0xff]
    %v141 = vld [vmem:[#allocation5 + $0x150] sm:$0xff]
    %v142 = vld [vmem:[#allocation5 + $0x158] sm:$0xff]
    %v143 = vld [vmem:[#allocation5 + $0x160] sm:$0xff]
    %v144 = vld [vmem:[#allocation5 + $0x168] sm:$0xff]
    %v145 = vld [vmem:[#allocation5 + $0x170] sm:$0xff]
    %v146 = vld [vmem:[#allocation5 + $0x178] sm:$0xff]
    %v147 = vld [vmem:[#allocation5 + $0x180] sm:$0xff]
    %v148 = vld [vmem:[#allocation5 + $0x188] sm:$0xff]
    %v149 = vld [vmem:[#allocation5 + $0x190] sm:$0xff]
    %v150 = vld [vmem:[#allocation5 + $0x198] sm:$0xff]
    %v151 = vld [vmem:[#allocation5 + $0x1a0] sm:$0xff]
    %v152 = vld [vmem:[#allocation5 + $0x1a8] sm:$0xff]
    %v153 = vld [vmem:[#allocation5 + $0x1b0] sm:$0xff]
    %v154 = vld [vmem:[#allocation5 + $0x1b8] sm:$0xff]
    %v155 = vld [vmem:[#allocation5 + $0x1c0] sm:$0xff]
    %v156 = vld [vmem:[#allocation5 + $0x1c8] sm:$0xff]
    %v157 = vld [vmem:[#allocation5 + $0x1d0] sm:$0xff]
    %v158 = vld [vmem:[#allocation5 + $0x1d8] sm:$0xff]
    %v159 = vld [vmem:[#allocation5 + $0x1e0] sm:$0xff]
    %v160 = vld [vmem:[#allocation5 + $0x1e8] sm:$0xff]
    %v161 = vld [vmem:[#allocation5 + $0x1f0] sm:$0xff]
    %v162 = vld [vmem:[#allocation5 + $0x1f8] sm:$0xff]
    %v163 = vld [vmem:[%s2] sm:$0xf]
    %v165 = vlaneseq
    %v166 = vshrl.u32 %v165, 7
    %v167 = vsub.s32 0, %v166
    %v168 = vrot.slane %v163, %v167
    %v169 = vlaneseq
    %v170 = vshrl.u32 %v169, 7
    %v171 = vsub.s32 1, %v170
    %v172 = vrot.slane %v163, %v171
    %v173 = vlaneseq
    %v174 = vshrl.u32 %v173, 7
    %v175 = vsub.s32 2, %v174
    %v176 = vrot.slane %v163, %v175
    %v177 = vlaneseq
    %v178 = vshrl.u32 %v177, 7
    %v179 = vsub.s32 3, %v178
    %v180 = vrot.slane %v163, %v179
    %v186 = vunpack.c.l.b16 %v98
    %v187 = vunpack.c.h.b16 %v98
    %v188 = vpack.c.b16 %v186, %v186
    %v189 = vpack.c.b16 %v187, %v187
    %v256 = vunpack.c.l.b16 %v99
    %v257 = vunpack.c.h.b16 %v99
    %v258 = vunpack.c.l.b16 %v100
    %v259 = vunpack.c.h.b16 %v100
    %v260 = vunpack.c.l.b16 %v101
    %v261 = vunpack.c.h.b16 %v101
    %v262 = vunpack.c.l.b16 %v102
    %v263 = vunpack.c.h.b16 %v102
    %v264 = vunpack.c.l.b16 %v103
    %v265 = vunpack.c.h.b16 %v103
    %v266 = vunpack.c.l.b16 %v104
    %v267 = vunpack.c.h.b16 %v104
    %v268 = vunpack.c.l.b16 %v105
    %v269 = vunpack.c.h.b16 %v105
    %v270 = vunpack.c.l.b16 %v106
    %v271 = vunpack.c.h.b16 %v106
    %v272 = vunpack.c.l.b16 %v107
    %v273 = vunpack.c.h.b16 %v107
    %v274 = vunpack.c.l.b16 %v108
    %v275 = vunpack.c.h.b16 %v108
    %v276 = vunpack.c.l.b16 %v109
    %v277 = vunpack.c.h.b16 %v109
    %v278 = vunpack.c.l.b16 %v110
    %v279 = vunpack.c.h.b16 %v110
    %v280 = vunpack.c.l.b16 %v111
    %v281 = vunpack.c.h.b16 %v111
    %v282 = vunpack.c.l.b16 %v112
    %v283 = vunpack.c.h.b16 %v112
    %v284 = vunpack.c.l.b16 %v113
    %v285 = vunpack.c.h.b16 %v113
    %v286 = vunpack.c.l.b16 %v114
    %v287 = vunpack.c.h.b16 %v114
    %v288 = vunpack.c.l.b16 %v115
    %v289 = vunpack.c.h.b16 %v115
    %v290 = vunpack.c.l.b16 %v116
    %v291 = vunpack.c.h.b16 %v116
    %v292 = vunpack.c.l.b16 %v117
    %v293 = vunpack.c.h.b16 %v117
    %v294 = vunpack.c.l.b16 %v118
    %v295 = vunpack.c.h.b16 %v118
    %v296 = vunpack.c.l.b16 %v119
    %v297 = vunpack.c.h.b16 %v119
    %v298 = vunpack.c.l.b16 %v120
    %v299 = vunpack.c.h.b16 %v120
    %v300 = vunpack.c.l.b16 %v121
    %v301 = vunpack.c.h.b16 %v121
    %v302 = vunpack.c.l.b16 %v122
    %v303 = vunpack.c.h.b16 %v122
    %v304 = vunpack.c.l.b16 %v123
    %v305 = vunpack.c.h.b16 %v123
    %v306 = vunpack.c.l.b16 %v124
    %v307 = vunpack.c.h.b16 %v124
    %v308 = vunpack.c.l.b16 %v125
    %v309 = vunpack.c.h.b16 %v125
    %v310 = vunpack.c.l.b16 %v126
    %v311 = vunpack.c.h.b16 %v126
    %v312 = vunpack.c.l.b16 %v127
    %v313 = vunpack.c.h.b16 %v127
    %v314 = vunpack.c.l.b16 %v128
    %v315 = vunpack.c.h.b16 %v128
    %v316 = vunpack.c.l.b16 %v129
    %v317 = vunpack.c.h.b16 %v129
    %v318 = vunpack.c.l.b16 %v130
    %v319 = vunpack.c.h.b16 %v130
    %v320 = vunpack.c.l.b16 %v131
    %v321 = vunpack.c.h.b16 %v131
    %v322 = vunpack.c.l.b16 %v132
    %v323 = vunpack.c.h.b16 %v132
    %v324 = vunpack.c.l.b16 %v133
    %v325 = vunpack.c.h.b16 %v133
    %v326 = vunpack.c.l.b16 %v134
    %v327 = vunpack.c.h.b16 %v134
    %v328 = vunpack.c.l.b16 %v135
    %v329 = vunpack.c.h.b16 %v135
    %v330 = vunpack.c.l.b16 %v136
    %v331 = vunpack.c.h.b16 %v136
    %v332 = vunpack.c.l.b16 %v137
    %v333 = vunpack.c.h.b16 %v137
    %v334 = vunpack.c.l.b16 %v138
    %v335 = vunpack.c.h.b16 %v138
    %v336 = vunpack.c.l.b16 %v139
    %v337 = vunpack.c.h.b16 %v139
    %v338 = vunpack.c.l.b16 %v140
    %v339 = vunpack.c.h.b16 %v140
    %v340 = vunpack.c.l.b16 %v141
    %v341 = vunpack.c.h.b16 %v141
    %v342 = vunpack.c.l.b16 %v142
    %v343 = vunpack.c.h.b16 %v142
    %v344 = vunpack.c.l.b16 %v143
    %v345 = vunpack.c.h.b16 %v143
    %v346 = vunpack.c.l.b16 %v144
    %v347 = vunpack.c.h.b16 %v144
    %v348 = vunpack.c.l.b16 %v145
    %v349 = vunpack.c.h.b16 %v145
    %v350 = vunpack.c.l.b16 %v146
    %v351 = vunpack.c.h.b16 %v146
    %v352 = vunpack.c.l.b16 %v147
    %v353 = vunpack.c.h.b16 %v147
    %v354 = vunpack.c.l.b16 %v148
    %v355 = vunpack.c.h.b16 %v148
    %v356 = vunpack.c.l.b16 %v149
    %v357 = vunpack.c.h.b16 %v149
    %v358 = vunpack.c.l.b16 %v150
    %v359 = vunpack.c.h.b16 %v150
    %v360 = vunpack.c.l.b16 %v151
    %v361 = vunpack.c.h.b16 %v151
    %v362 = vunpack.c.l.b16 %v152
    %v363 = vunpack.c.h.b16 %v152
    %v364 = vunpack.c.l.b16 %v153
    %v365 = vunpack.c.h.b16 %v153
    %v366 = vunpack.c.l.b16 %v154
    %v367 = vunpack.c.h.b16 %v154
    %v368 = vunpack.c.l.b16 %v155
    %v369 = vunpack.c.h.b16 %v155
    %v370 = vunpack.c.l.b16 %v156
    %v371 = vunpack.c.h.b16 %v156
    %v372 = vunpack.c.l.b16 %v157
    %v373 = vunpack.c.h.b16 %v157
    %v374 = vunpack.c.l.b16 %v158
    %v375 = vunpack.c.h.b16 %v158
    %v376 = vunpack.c.l.b16 %v159
    %v377 = vunpack.c.h.b16 %v159
    %v378 = vunpack.c.l.b16 %v160
    %v379 = vunpack.c.h.b16 %v160
    %v380 = vunpack.c.l.b16 %v161
    %v381 = vunpack.c.h.b16 %v161
    %v382 = vunpack.c.l.b16 %v162
    %v383 = vunpack.c.h.b16 %v162
    %v384 = vpack.c.b16 %v260, %v256
    %v385 = vpack.c.b16 %v261, %v257
    %v386 = vpack.c.b16 %v262, %v258
    %v387 = vpack.c.b16 %v263, %v259
    %v388 = vpack.c.b16 %v268, %v264
    %v389 = vpack.c.b16 %v269, %v265
    %v390 = vpack.c.b16 %v270, %v266
    %v391 = vpack.c.b16 %v271, %v267
    %v392 = vpack.c.b16 %v276, %v272
    %v393 = vpack.c.b16 %v277, %v273
    %v394 = vpack.c.b16 %v278, %v274
    %v395 = vpack.c.b16 %v279, %v275
    %v396 = vpack.c.b16 %v284, %v280
    %v397 = vpack.c.b16 %v285, %v281
    %v398 = vpack.c.b16 %v286, %v282
    %v399 = vpack.c.b16 %v287, %v283
    %v400 = vpack.c.b16 %v292, %v288
    %v401 = vpack.c.b16 %v293, %v289
    %v402 = vpack.c.b16 %v294, %v290
    %v403 = vpack.c.b16 %v295, %v291
    %v404 = vpack.c.b16 %v300, %v296
    %v405 = vpack.c.b16 %v301, %v297
    %v406 = vpack.c.b16 %v302, %v298
    %v407 = vpack.c.b16 %v303, %v299
    %v408 = vpack.c.b16 %v308, %v304
    %v409 = vpack.c.b16 %v309, %v305
    %v410 = vpack.c.b16 %v310, %v306
    %v411 = vpack.c.b16 %v311, %v307
    %v412 = vpack.c.b16 %v316, %v312
    %v413 = vpack.c.b16 %v317, %v313
    %v414 = vpack.c.b16 %v318, %v314
    %v415 = vpack.c.b16 %v319, %v315
    %v416 = vpack.c.b16 %v324, %v320
    %v417 = vpack.c.b16 %v325, %v321
    %v418 = vpack.c.b16 %v326, %v322
    %v419 = vpack.c.b16 %v327, %v323
    %v420 = vpack.c.b16 %v332, %v328
    %v421 = vpack.c.b16 %v333, %v329
    %v422 = vpack.c.b16 %v334, %v330
    %v423 = vpack.c.b16 %v335, %v331
    %v424 = vpack.c.b16 %v340, %v336
    %v425 = vpack.c.b16 %v341, %v337
    %v426 = vpack.c.b16 %v342, %v338
    %v427 = vpack.c.b16 %v343, %v339
    %v428 = vpack.c.b16 %v348, %v344
    %v429 = vpack.c.b16 %v349, %v345
    %v430 = vpack.c.b16 %v350, %v346
    %v431 = vpack.c.b16 %v351, %v347
    %v432 = vpack.c.b16 %v356, %v352
    %v433 = vpack.c.b16 %v357, %v353
    %v434 = vpack.c.b16 %v358, %v354
    %v435 = vpack.c.b16 %v359, %v355
    %v436 = vpack.c.b16 %v364, %v360
    %v437 = vpack.c.b16 %v365, %v361
    %v438 = vpack.c.b16 %v366, %v362
    %v439 = vpack.c.b16 %v367, %v363
    %v440 = vpack.c.b16 %v372, %v368
    %v441 = vpack.c.b16 %v373, %v369
    %v442 = vpack.c.b16 %v374, %v370
    %v443 = vpack.c.b16 %v375, %v371
    %v444 = vpack.c.b16 %v380, %v376
    %v445 = vpack.c.b16 %v381, %v377
    %v446 = vpack.c.b16 %v382, %v378
    %v447 = vpack.c.b16 %v383, %v379
    %512 = vmatprep.subr.bf16.mxu0 %v413
    %513 = vmatpush1.bf16.msra.mxu0 %v412
    %514 = vmatprep.subr.bf16.mxu0 %v409
    %515 = vmatpush1.bf16.msra.mxu0 %v408
    %516 = vmatprep.subr.bf16.mxu0 %v405
    %517 = vmatpush1.bf16.msra.mxu0 %v404
    %518 = vmatprep.subr.bf16.mxu0 %v401
    %519 = vmatpush1.bf16.msra.mxu0 %v400
    %520 = vmatprep.subr.bf16.mxu0 %v397
    %521 = vmatpush1.bf16.msra.mxu0 %v396
    %522 = vmatprep.subr.bf16.mxu0 %v393
    %523 = vmatpush1.bf16.msra.mxu0 %v392
    %524 = vmatprep.subr.bf16.mxu0 %v389
    %525 = vmatpush1.bf16.msra.mxu0 %v388
    %526 = vmatprep.subr.bf16.mxu0 %v385
    %527 = vmatpush1.bf16.msra.mxu0 %v384
    %528 = vmatprep.subr.bf16.mxu0 %v445
    %529 = vmatpush2.bf16.msra.mxu0 %v444
    %530 = vmatprep.subr.bf16.mxu0 %v441
    %531 = vmatpush2.bf16.msra.mxu0 %v440
    %532 = vmatprep.subr.bf16.mxu0 %v437
    %533 = vmatpush2.bf16.msra.mxu0 %v436
    %534 = vmatprep.subr.bf16.mxu0 %v433
    %535 = vmatpush2.bf16.msra.mxu0 %v432
    %536 = vmatprep.subr.bf16.mxu0 %v429
    %537 = vmatpush2.bf16.msra.mxu0 %v428
    %538 = vmatprep.subr.bf16.mxu0 %v425
    %539 = vmatpush2.bf16.msra.mxu0 %v424
    %540 = vmatprep.subr.bf16.mxu0 %v421
    %541 = vmatpush2.bf16.msra.mxu0 %v420
    %542 = vmatprep.subr.bf16.mxu0 %v417
    %543 = vmatpush2.bf16.msra.mxu0 %v416
    %544 = vmatprep.mubr.bf16.mxu0 %v189
    %545 = vmatmul.mubr.bf16.gmra.mxu0 %v188
    %v546 = vpop.f32.mrf.mxu0
    %v547 = vadd.f32 %v168, %v546
    %v548 = vpop.f32.mrf.mxu0
    %v549 = vadd.f32 %v172, %v548
    %v550 = vpop.f32.mrf.mxu0
    %v551 = vpop.f32.mrf.mxu0
    %552 = vdwg.mxu0
    %553 = vmatprep.subr.bf16.mxu0 %v415
    %554 = vmatpush1.bf16.msra.mxu0 %v414
    %555 = vmatprep.subr.bf16.mxu0 %v411
    %556 = vmatpush1.bf16.msra.mxu0 %v410
    %557 = vmatprep.subr.bf16.mxu0 %v407
    %558 = vmatpush1.bf16.msra.mxu0 %v406
    %559 = vmatprep.subr.bf16.mxu0 %v403
    %560 = vmatpush1.bf16.msra.mxu0 %v402
    %561 = vmatprep.subr.bf16.mxu0 %v399
    %562 = vmatpush1.bf16.msra.mxu0 %v398
    %563 = vmatprep.subr.bf16.mxu0 %v395
    %564 = vmatpush1.bf16.msra.mxu0 %v394
    %565 = vmatprep.subr.bf16.mxu0 %v391
    %566 = vmatpush1.bf16.msra.mxu0 %v390
    %567 = vmatprep.subr.bf16.mxu0 %v387
    %568 = vmatpush1.bf16.msra.mxu0 %v386
    %569 = vmatprep.subr.bf16.mxu0 %v447
    %570 = vmatpush2.bf16.msra.mxu0 %v446
    %571 = vmatprep.subr.bf16.mxu0 %v443
    %572 = vmatpush2.bf16.msra.mxu0 %v442
    %573 = vmatprep.subr.bf16.mxu0 %v439
    %574 = vmatpush2.bf16.msra.mxu0 %v438
    %575 = vmatprep.subr.bf16.mxu0 %v435
    %576 = vmatpush2.bf16.msra.mxu0 %v434
    %577 = vmatprep.subr.bf16.mxu0 %v431
    %578 = vmatpush2.bf16.msra.mxu0 %v430
    %579 = vmatprep.subr.bf16.mxu0 %v427
    %580 = vmatpush2.bf16.msra.mxu0 %v426
    %581 = vmatprep.subr.bf16.mxu0 %v423
    %582 = vmatpush2.bf16.msra.mxu0 %v422
    %583 = vmatprep.subr.bf16.mxu0 %v419
    %584 = vmatpush2.bf16.msra.mxu0 %v418
    %585 = vmatprep.mubr.bf16.mxu0 %v189
    %586 = vmatmul.mubr.bf16.gmra.mxu0 %v188
    %v587 = vpop.f32.mrf.mxu0
    %v588 = vadd.f32 %v176, %v587
    %v589 = vpop.f32.mrf.mxu0
    %v590 = vadd.f32 %v180, %v589
    %v591 = vpop.f32.mrf.mxu0
    %v592 = vpop.f32.mrf.mxu0
    %593 = vdwg.mxu0
    %vm594 = vcmp.gt.f32.partialorder %v547, 0.0
    %vm595 = vcmp.gt.f32.partialorder %v549, 0.0
    %vm596 = vcmp.gt.f32.partialorder %v588, 0.0
    %vm597 = vcmp.gt.f32.partialorder %v590, 0.0
    %v598 = vmul.f32 %v547, 0.2
    %v599 = vmul.f32 %v549, 0.2
    %v600 = vmul.f32 %v588, 0.2
    %v601 = vmul.f32 %v590, 0.2
    %v602 = vsel %vm594, %v547, %v598
    %v603 = vsel %vm595, %v549, %v599
    %v604 = vsel %vm596, %v588, %v600
    %v605 = vsel %vm597, %v590, %v601
    %v606 = vpack.c.bf16 %v602, %v602
    %v607 = vpack.c.bf16 %v603, %v603
    %v608 = vpack.c.bf16 %v604, %v604
    %v609 = vpack.c.bf16 %v605, %v605
    %v610 = vld [vmem:[#allocation7] sm:$0xff]
    %v611 = vld [vmem:[#allocation7 + $0x8] sm:$0xff]
    %v612 = vld [vmem:[#allocation7 + $0x10] sm:$0xff]
    %v613 = vld [vmem:[#allocation7 + $0x18] sm:$0xff]
    %v614 = vld [vmem:[#allocation7 + $0x20] sm:$0xff]
    %v615 = vld [vmem:[#allocation7 + $0x28] sm:$0xff]
    %v616 = vld [vmem:[#allocation7 + $0x30] sm:$0xff]
    %v617 = vld [vmem:[#allocation7 + $0x38] sm:$0xff]
    %v618 = vld [vmem:[#allocation7 + $0x40] sm:$0xff]
    %v619 = vld [vmem:[#allocation7 + $0x48] sm:$0xff]
    %v620 = vld [vmem:[#allocation7 + $0x50] sm:$0xff]
    %v621 = vld [vmem:[#allocation7 + $0x58] sm:$0xff]
    %v622 = vld [vmem:[#allocation7 + $0x60] sm:$0xff]
    %v623 = vld [vmem:[#allocation7 + $0x68] sm:$0xff]
    %v624 = vld [vmem:[#allocation7 + $0x70] sm:$0xff]
    %v625 = vld [vmem:[#allocation7 + $0x78] sm:$0xff]
    %v626 = vld [vmem:[#allocation7 + $0x80] sm:$0xff]
    %v627 = vld [vmem:[#allocation7 + $0x88] sm:$0xff]
    %v628 = vld [vmem:[#allocation7 + $0x90] sm:$0xff]
    %v629 = vld [vmem:[#allocation7 + $0x98] sm:$0xff]
    %v630 = vld [vmem:[#allocation7 + $0xa0] sm:$0xff]
    %v631 = vld [vmem:[#allocation7 + $0xa8] sm:$0xff]
    %v632 = vld [vmem:[#allocation7 + $0xb0] sm:$0xff]
    %v633 = vld [vmem:[#allocation7 + $0xb8] sm:$0xff]
    %v634 = vld [vmem:[#allocation7 + $0xc0] sm:$0xff]
    %v635 = vld [vmem:[#allocation7 + $0xc8] sm:$0xff]
    %v636 = vld [vmem:[#allocation7 + $0xd0] sm:$0xff]
    %v637 = vld [vmem:[#allocation7 + $0xd8] sm:$0xff]
    %v638 = vld [vmem:[#allocation7 + $0xe0] sm:$0xff]
    %v639 = vld [vmem:[#allocation7 + $0xe8] sm:$0xff]
    %v640 = vld [vmem:[#allocation7 + $0xf0] sm:$0xff]
    %v641 = vld [vmem:[#allocation7 + $0xf8] sm:$0xff]
    %v642 = vld [vmem:[#allocation7 + $0x100] sm:$0xff]
    %v643 = vld [vmem:[#allocation7 + $0x108] sm:$0xff]
    %v644 = vld [vmem:[#allocation7 + $0x110] sm:$0xff]
    %v645 = vld [vmem:[#allocation7 + $0x118] sm:$0xff]
    %v646 = vld [vmem:[#allocation7 + $0x120] sm:$0xff]
    %v647 = vld [vmem:[#allocation7 + $0x128] sm:$0xff]
    %v648 = vld [vmem:[#allocation7 + $0x130] sm:$0xff]
    %v649 = vld [vmem:[#allocation7 + $0x138] sm:$0xff]
    %v650 = vld [vmem:[#allocation7 + $0x140] sm:$0xff]
    %v651 = vld [vmem:[#allocation7 + $0x148] sm:$0xff]
    %v652 = vld [vmem:[#allocation7 + $0x150] sm:$0xff]
    %v653 = vld [vmem:[#allocation7 + $0x158] sm:$0xff]
    %v654 = vld [vmem:[#allocation7 + $0x160] sm:$0xff]
    %v655 = vld [vmem:[#allocation7 + $0x168] sm:$0xff]
    %v656 = vld [vmem:[#allocation7 + $0x170] sm:$0xff]
    %v657 = vld [vmem:[#allocation7 + $0x178] sm:$0xff]
    %v658 = vld [vmem:[#allocation7 + $0x180] sm:$0xff]
    %v659 = vld [vmem:[#allocation7 + $0x188] sm:$0xff]
    %v660 = vld [vmem:[#allocation7 + $0x190] sm:$0xff]
    %v661 = vld [vmem:[#allocation7 + $0x198] sm:$0xff]
    %v662 = vld [vmem:[#allocation7 + $0x1a0] sm:$0xff]
    %v663 = vld [vmem:[#allocation7 + $0x1a8] sm:$0xff]
    %v664 = vld [vmem:[#allocation7 + $0x1b0] sm:$0xff]
    %v665 = vld [vmem:[#allocation7 + $0x1b8] sm:$0xff]
    %v666 = vld [vmem:[#allocation7 + $0x1c0] sm:$0xff]
    %v667 = vld [vmem:[#allocation7 + $0x1c8] sm:$0xff]
    %v668 = vld [vmem:[#allocation7 + $0x1d0] sm:$0xff]
    %v669 = vld [vmem:[#allocation7 + $0x1d8] sm:$0xff]
    %v670 = vld [vmem:[#allocation7 + $0x1e0] sm:$0xff]
    %v671 = vld [vmem:[#allocation7 + $0x1e8] sm:$0xff]
    %v672 = vld [vmem:[#allocation7 + $0x1f0] sm:$0xff]
    %v673 = vld [vmem:[#allocation7 + $0x1f8] sm:$0xff]
    %v674 = vld [vmem:[#allocation7 + $0x200] sm:$0xff]
    %v675 = vld [vmem:[#allocation7 + $0x208] sm:$0xff]
    %v676 = vld [vmem:[#allocation7 + $0x210] sm:$0xff]
    %v677 = vld [vmem:[#allocation7 + $0x218] sm:$0xff]
    %v678 = vld [vmem:[#allocation7 + $0x220] sm:$0xff]
    %v679 = vld [vmem:[#allocation7 + $0x228] sm:$0xff]
    %v680 = vld [vmem:[#allocation7 + $0x230] sm:$0xff]
    %v681 = vld [vmem:[#allocation7 + $0x238] sm:$0xff]
    %v682 = vld [vmem:[#allocation7 + $0x240] sm:$0xff]
    %v683 = vld [vmem:[#allocation7 + $0x248] sm:$0xff]
    %v684 = vld [vmem:[#allocation7 + $0x250] sm:$0xff]
    %v685 = vld [vmem:[#allocation7 + $0x258] sm:$0xff]
    %v686 = vld [vmem:[#allocation7 + $0x260] sm:$0xff]
    %v687 = vld [vmem:[#allocation7 + $0x268] sm:$0xff]
    %v688 = vld [vmem:[#allocation7 + $0x270] sm:$0xff]
    %v689 = vld [vmem:[#allocation7 + $0x278] sm:$0xff]
    %v690 = vld [vmem:[#allocation7 + $0x280] sm:$0xff]
    %v691 = vld [vmem:[#allocation7 + $0x288] sm:$0xff]
    %v692 = vld [vmem:[#allocation7 + $0x290] sm:$0xff]
    %v693 = vld [vmem:[#allocation7 + $0x298] sm:$0xff]
    %v694 = vld [vmem:[#allocation7 + $0x2a0] sm:$0xff]
    %v695 = vld [vmem:[#allocation7 + $0x2a8] sm:$0xff]
    %v696 = vld [vmem:[#allocation7 + $0x2b0] sm:$0xff]
    %v697 = vld [vmem:[#allocation7 + $0x2b8] sm:$0xff]
    %v698 = vld [vmem:[#allocation7 + $0x2c0] sm:$0xff]
    %v699 = vld [vmem:[#allocation7 + $0x2c8] sm:$0xff]
    %v700 = vld [vmem:[#allocation7 + $0x2d0] sm:$0xff]
    %v701 = vld [vmem:[#allocation7 + $0x2d8] sm:$0xff]
    %v702 = vld [vmem:[#allocation7 + $0x2e0] sm:$0xff]
    %v703 = vld [vmem:[#allocation7 + $0x2e8] sm:$0xff]
    %v704 = vld [vmem:[#allocation7 + $0x2f0] sm:$0xff]
    %v705 = vld [vmem:[#allocation7 + $0x2f8] sm:$0xff]
    %v706 = vld [vmem:[#allocation7 + $0x300] sm:$0xff]
    %v707 = vld [vmem:[#allocation7 + $0x308] sm:$0xff]
    %v708 = vld [vmem:[#allocation7 + $0x310] sm:$0xff]
    %v709 = vld [vmem:[#allocation7 + $0x318] sm:$0xff]
    %v710 = vld [vmem:[#allocation7 + $0x320] sm:$0xff]
    %v711 = vld [vmem:[#allocation7 + $0x328] sm:$0xff]
    %v712 = vld [vmem:[#allocation7 + $0x330] sm:$0xff]
    %v713 = vld [vmem:[#allocation7 + $0x338] sm:$0xff]
    %v714 = vld [vmem:[#allocation7 + $0x340] sm:$0xff]
    %v715 = vld [vmem:[#allocation7 + $0x348] sm:$0xff]
    %v716 = vld [vmem:[#allocation7 + $0x350] sm:$0xff]
    %v717 = vld [vmem:[#allocation7 + $0x358] sm:$0xff]
    %v718 = vld [vmem:[#allocation7 + $0x360] sm:$0xff]
    %v719 = vld [vmem:[#allocation7 + $0x368] sm:$0xff]
    %v720 = vld [vmem:[#allocation7 + $0x370] sm:$0xff]
    %v721 = vld [vmem:[#allocation7 + $0x378] sm:$0xff]
    %v722 = vld [vmem:[#allocation7 + $0x380] sm:$0xff]
    %v723 = vld [vmem:[#allocation7 + $0x388] sm:$0xff]
    %v724 = vld [vmem:[#allocation7 + $0x390] sm:$0xff]
    %v725 = vld [vmem:[#allocation7 + $0x398] sm:$0xff]
    %v726 = vld [vmem:[#allocation7 + $0x3a0] sm:$0xff]
    %v727 = vld [vmem:[#allocation7 + $0x3a8] sm:$0xff]
    %v728 = vld [vmem:[#allocation7 + $0x3b0] sm:$0xff]
    %v729 = vld [vmem:[#allocation7 + $0x3b8] sm:$0xff]
    %v730 = vld [vmem:[#allocation7 + $0x3c0] sm:$0xff]
    %v731 = vld [vmem:[#allocation7 + $0x3c8] sm:$0xff]
    %v732 = vld [vmem:[#allocation7 + $0x3d0] sm:$0xff]
    %v733 = vld [vmem:[#allocation7 + $0x3d8] sm:$0xff]
    %v734 = vld [vmem:[#allocation7 + $0x3e0] sm:$0xff]
    %v735 = vld [vmem:[#allocation7 + $0x3e8] sm:$0xff]
    %v736 = vld [vmem:[#allocation7 + $0x3f0] sm:$0xff]
    %v737 = vld [vmem:[#allocation7 + $0x3f8] sm:$0xff]
    %v738 = vld [vmem:[%s4] sm:$0xf]
    %v740 = vlaneseq
    %v741 = vshrl.u32 %v740, 7
    %v742 = vsub.s32 0, %v741
    %v743 = vrot.slane %v738, %v742
    %v744 = vlaneseq
    %v745 = vshrl.u32 %v744, 7
    %v746 = vsub.s32 1, %v745
    %v747 = vrot.slane %v738, %v746
    %v748 = vlaneseq
    %v749 = vshrl.u32 %v748, 7
    %v750 = vsub.s32 2, %v749
    %v751 = vrot.slane %v738, %v750
    %v752 = vlaneseq
    %v753 = vshrl.u32 %v752, 7
    %v754 = vsub.s32 3, %v753
    %v755 = vrot.slane %v738, %v754
    %v888 = vunpack.c.l.b16 %v610
    %v889 = vunpack.c.h.b16 %v610
    %v890 = vunpack.c.l.b16 %v611
    %v891 = vunpack.c.h.b16 %v611
    %v892 = vunpack.c.l.b16 %v612
    %v893 = vunpack.c.h.b16 %v612
    %v894 = vunpack.c.l.b16 %v613
    %v895 = vunpack.c.h.b16 %v613
    %v896 = vunpack.c.l.b16 %v614
    %v897 = vunpack.c.h.b16 %v614
    %v898 = vunpack.c.l.b16 %v615
    %v899 = vunpack.c.h.b16 %v615
    %v900 = vunpack.c.l.b16 %v616
    %v901 = vunpack.c.h.b16 %v616
    %v902 = vunpack.c.l.b16 %v617
    %v903 = vunpack.c.h.b16 %v617
    %v904 = vunpack.c.l.b16 %v618
    %v905 = vunpack.c.h.b16 %v618
    %v906 = vunpack.c.l.b16 %v619
    %v907 = vunpack.c.h.b16 %v619
    %v908 = vunpack.c.l.b16 %v620
    %v909 = vunpack.c.h.b16 %v620
    %v910 = vunpack.c.l.b16 %v621
    %v911 = vunpack.c.h.b16 %v621
    %v912 = vunpack.c.l.b16 %v622
    %v913 = vunpack.c.h.b16 %v622
    %v914 = vunpack.c.l.b16 %v623
    %v915 = vunpack.c.h.b16 %v623
    %v916 = vunpack.c.l.b16 %v624
    %v917 = vunpack.c.h.b16 %v624
    %v918 = vunpack.c.l.b16 %v625
    %v919 = vunpack.c.h.b16 %v625
    %v920 = vunpack.c.l.b16 %v626
    %v921 = vunpack.c.h.b16 %v626
    %v922 = vunpack.c.l.b16 %v627
    %v923 = vunpack.c.h.b16 %v627
    %v924 = vunpack.c.l.b16 %v628
    %v925 = vunpack.c.h.b16 %v628
    %v926 = vunpack.c.l.b16 %v629
    %v927 = vunpack.c.h.b16 %v629
    %v928 = vunpack.c.l.b16 %v630
    %v929 = vunpack.c.h.b16 %v630
    %v930 = vunpack.c.l.b16 %v631
    %v931 = vunpack.c.h.b16 %v631
    %v932 = vunpack.c.l.b16 %v632
    %v933 = vunpack.c.h.b16 %v632
    %v934 = vunpack.c.l.b16 %v633
    %v935 = vunpack.c.h.b16 %v633
    %v936 = vunpack.c.l.b16 %v634
    %v937 = vunpack.c.h.b16 %v634
    %v938 = vunpack.c.l.b16 %v635
    %v939 = vunpack.c.h.b16 %v635
    %v940 = vunpack.c.l.b16 %v636
    %v941 = vunpack.c.h.b16 %v636
    %v942 = vunpack.c.l.b16 %v637
    %v943 = vunpack.c.h.b16 %v637
    %v944 = vunpack.c.l.b16 %v638
    %v945 = vunpack.c.h.b16 %v638
    %v946 = vunpack.c.l.b16 %v639
    %v947 = vunpack.c.h.b16 %v639
    %v948 = vunpack.c.l.b16 %v640
    %v949 = vunpack.c.h.b16 %v640
    %v950 = vunpack.c.l.b16 %v641
    %v951 = vunpack.c.h.b16 %v641
    %v952 = vunpack.c.l.b16 %v642
    %v953 = vunpack.c.h.b16 %v642
    %v954 = vunpack.c.l.b16 %v643
    %v955 = vunpack.c.h.b16 %v643
    %v956 = vunpack.c.l.b16 %v644
    %v957 = vunpack.c.h.b16 %v644
    %v958 = vunpack.c.l.b16 %v645
    %v959 = vunpack.c.h.b16 %v645
    %v960 = vunpack.c.l.b16 %v646
    %v961 = vunpack.c.h.b16 %v646
    %v962 = vunpack.c.l.b16 %v647
    %v963 = vunpack.c.h.b16 %v647
    %v964 = vunpack.c.l.b16 %v648
    %v965 = vunpack.c.h.b16 %v648
    %v966 = vunpack.c.l.b16 %v649
    %v967 = vunpack.c.h.b16 %v649
    %v968 = vunpack.c.l.b16 %v650
    %v969 = vunpack.c.h.b16 %v650
    %v970 = vunpack.c.l.b16 %v651
    %v971 = vunpack.c.h.b16 %v651
    %v972 = vunpack.c.l.b16 %v652
    %v973 = vunpack.c.h.b16 %v652
    %v974 = vunpack.c.l.b16 %v653
    %v975 = vunpack.c.h.b16 %v653
    %v976 = vunpack.c.l.b16 %v654
    %v977 = vunpack.c.h.b16 %v654
    %v978 = vunpack.c.l.b16 %v655
    %v979 = vunpack.c.h.b16 %v655
    %v980 = vunpack.c.l.b16 %v656
    %v981 = vunpack.c.h.b16 %v656
    %v982 = vunpack.c.l.b16 %v657
    %v983 = vunpack.c.h.b16 %v657
    %v984 = vunpack.c.l.b16 %v658
    %v985 = vunpack.c.h.b16 %v658
    %v986 = vunpack.c.l.b16 %v659
    %v987 = vunpack.c.h.b16 %v659
    %v988 = vunpack.c.l.b16 %v660
    %v989 = vunpack.c.h.b16 %v660
    %v990 = vunpack.c.l.b16 %v661
    %v991 = vunpack.c.h.b16 %v661
    %v992 = vunpack.c.l.b16 %v662
    %v993 = vunpack.c.h.b16 %v662
    %v994 = vunpack.c.l.b16 %v663
    %v995 = vunpack.c.h.b16 %v663
    %v996 = vunpack.c.l.b16 %v664
    %v997 = vunpack.c.h.b16 %v664
    %v998 = vunpack.c.l.b16 %v665
    %v999 = vunpack.c.h.b16 %v665
    %v1000 = vunpack.c.l.b16 %v666
    %v1001 = vunpack.c.h.b16 %v666
    %v1002 = vunpack.c.l.b16 %v667
    %v1003 = vunpack.c.h.b16 %v667
    %v1004 = vunpack.c.l.b16 %v668
    %v1005 = vunpack.c.h.b16 %v668
    %v1006 = vunpack.c.l.b16 %v669
    %v1007 = vunpack.c.h.b16 %v669
    %v1008 = vunpack.c.l.b16 %v670
    %v1009 = vunpack.c.h.b16 %v670
    %v1010 = vunpack.c.l.b16 %v671
    %v1011 = vunpack.c.h.b16 %v671
    %v1012 = vunpack.c.l.b16 %v672
    %v1013 = vunpack.c.h.b16 %v672
    %v1014 = vunpack.c.l.b16 %v673
    %v1015 = vunpack.c.h.b16 %v673
    %v1016 = vunpack.c.l.b16 %v674
    %v1017 = vunpack.c.h.b16 %v674
    %v1018 = vunpack.c.l.b16 %v675
    %v1019 = vunpack.c.h.b16 %v675
    %v1020 = vunpack.c.l.b16 %v676
    %v1021 = vunpack.c.h.b16 %v676
    %v1022 = vunpack.c.l.b16 %v677
    %v1023 = vunpack.c.h.b16 %v677
    %v1024 = vunpack.c.l.b16 %v678
    %v1025 = vunpack.c.h.b16 %v678
    %v1026 = vunpack.c.l.b16 %v679
    %v1027 = vunpack.c.h.b16 %v679
    %v1028 = vunpack.c.l.b16 %v680
    %v1029 = vunpack.c.h.b16 %v680
    %v1030 = vunpack.c.l.b16 %v681
    %v1031 = vunpack.c.h.b16 %v681
    %v1032 = vunpack.c.l.b16 %v682
    %v1033 = vunpack.c.h.b16 %v682
    %v1034 = vunpack.c.l.b16 %v683
    %v1035 = vunpack.c.h.b16 %v683
    %v1036 = vunpack.c.l.b16 %v684
    %v1037 = vunpack.c.h.b16 %v684
    %v1038 = vunpack.c.l.b16 %v685
    %v1039 = vunpack.c.h.b16 %v685
    %v1040 = vunpack.c.l.b16 %v686
    %v1041 = vunpack.c.h.b16 %v686
    %v1042 = vunpack.c.l.b16 %v687
    %v1043 = vunpack.c.h.b16 %v687
    %v1044 = vunpack.c.l.b16 %v688
    %v1045 = vunpack.c.h.b16 %v688
    %v1046 = vunpack.c.l.b16 %v689
    %v1047 = vunpack.c.h.b16 %v689
    %v1048 = vunpack.c.l.b16 %v690
    %v1049 = vunpack.c.h.b16 %v690
    %v1050 = vunpack.c.l.b16 %v691
    %v1051 = vunpack.c.h.b16 %v691
    %v1052 = vunpack.c.l.b16 %v692
    %v1053 = vunpack.c.h.b16 %v692
    %v1054 = vunpack.c.l.b16 %v693
    %v1055 = vunpack.c.h.b16 %v693
    %v1056 = vunpack.c.l.b16 %v694
    %v1057 = vunpack.c.h.b16 %v694
    %v1058 = vunpack.c.l.b16 %v695
    %v1059 = vunpack.c.h.b16 %v695
    %v1060 = vunpack.c.l.b16 %v696
    %v1061 = vunpack.c.h.b16 %v696
    %v1062 = vunpack.c.l.b16 %v697
    %v1063 = vunpack.c.h.b16 %v697
    %v1064 = vunpack.c.l.b16 %v698
    %v1065 = vunpack.c.h.b16 %v698
    %v1066 = vunpack.c.l.b16 %v699
    %v1067 = vunpack.c.h.b16 %v699
    %v1068 = vunpack.c.l.b16 %v700
    %v1069 = vunpack.c.h.b16 %v700
    %v1070 = vunpack.c.l.b16 %v701
    %v1071 = vunpack.c.h.b16 %v701
    %v1072 = vunpack.c.l.b16 %v702
    %v1073 = vunpack.c.h.b16 %v702
    %v1074 = vunpack.c.l.b16 %v703
    %v1075 = vunpack.c.h.b16 %v703
    %v1076 = vunpack.c.l.b16 %v704
    %v1077 = vunpack.c.h.b16 %v704
    %v1078 = vunpack.c.l.b16 %v705
    %v1079 = vunpack.c.h.b16 %v705
    %v1080 = vunpack.c.l.b16 %v706
    %v1081 = vunpack.c.h.b16 %v706
    %v1082 = vunpack.c.l.b16 %v707
    %v1083 = vunpack.c.h.b16 %v707
    %v1084 = vunpack.c.l.b16 %v708
    %v1085 = vunpack.c.h.b16 %v708
    %v1086 = vunpack.c.l.b16 %v709
    %v1087 = vunpack.c.h.b16 %v709
    %v1088 = vunpack.c.l.b16 %v710
    %v1089 = vunpack.c.h.b16 %v710
    %v1090 = vunpack.c.l.b16 %v711
    %v1091 = vunpack.c.h.b16 %v711
    %v1092 = vunpack.c.l.b16 %v712
    %v1093 = vunpack.c.h.b16 %v712
    %v1094 = vunpack.c.l.b16 %v713
    %v1095 = vunpack.c.h.b16 %v713
    %v1096 = vunpack.c.l.b16 %v714
    %v1097 = vunpack.c.h.b16 %v714
    %v1098 = vunpack.c.l.b16 %v715
    %v1099 = vunpack.c.h.b16 %v715
    %v1100 = vunpack.c.l.b16 %v716
    %v1101 = vunpack.c.h.b16 %v716
    %v1102 = vunpack.c.l.b16 %v717
    %v1103 = vunpack.c.h.b16 %v717
    %v1104 = vunpack.c.l.b16 %v718
    %v1105 = vunpack.c.h.b16 %v718
    %v1106 = vunpack.c.l.b16 %v719
    %v1107 = vunpack.c.h.b16 %v719
    %v1108 = vunpack.c.l.b16 %v720
    %v1109 = vunpack.c.h.b16 %v720
    %v1110 = vunpack.c.l.b16 %v721
    %v1111 = vunpack.c.h.b16 %v721
    %v1112 = vunpack.c.l.b16 %v722
    %v1113 = vunpack.c.h.b16 %v722
    %v1114 = vunpack.c.l.b16 %v723
    %v1115 = vunpack.c.h.b16 %v723
    %v1116 = vunpack.c.l.b16 %v724
    %v1117 = vunpack.c.h.b16 %v724
    %v1118 = vunpack.c.l.b16 %v725
    %v1119 = vunpack.c.h.b16 %v725
    %v1120 = vunpack.c.l.b16 %v726
    %v1121 = vunpack.c.h.b16 %v726
    %v1122 = vunpack.c.l.b16 %v727
    %v1123 = vunpack.c.h.b16 %v727
    %v1124 = vunpack.c.l.b16 %v728
    %v1125 = vunpack.c.h.b16 %v728
    %v1126 = vunpack.c.l.b16 %v729
    %v1127 = vunpack.c.h.b16 %v729
    %v1128 = vunpack.c.l.b16 %v730
    %v1129 = vunpack.c.h.b16 %v730
    %v1130 = vunpack.c.l.b16 %v731
    %v1131 = vunpack.c.h.b16 %v731
    %v1132 = vunpack.c.l.b16 %v732
    %v1133 = vunpack.c.h.b16 %v732
    %v1134 = vunpack.c.l.b16 %v733
    %v1135 = vunpack.c.h.b16 %v733
    %v1136 = vunpack.c.l.b16 %v734
    %v1137 = vunpack.c.h.b16 %v734
    %v1138 = vunpack.c.l.b16 %v735
    %v1139 = vunpack.c.h.b16 %v735
    %v1140 = vunpack.c.l.b16 %v736
    %v1141 = vunpack.c.h.b16 %v736
    %v1142 = vunpack.c.l.b16 %v737
    %v1143 = vunpack.c.h.b16 %v737
    %v1144 = vpack.c.b16 %v892, %v888
    %v1145 = vpack.c.b16 %v893, %v889
    %v1146 = vpack.c.b16 %v894, %v890
    %v1147 = vpack.c.b16 %v895, %v891
    %v1148 = vpack.c.b16 %v900, %v896
    %v1149 = vpack.c.b16 %v901, %v897
    %v1150 = vpack.c.b16 %v902, %v898
    %v1151 = vpack.c.b16 %v903, %v899
    %v1152 = vpack.c.b16 %v908, %v904
    %v1153 = vpack.c.b16 %v909, %v905
    %v1154 = vpack.c.b16 %v910, %v906
    %v1155 = vpack.c.b16 %v911, %v907
    %v1156 = vpack.c.b16 %v916, %v912
    %v1157 = vpack.c.b16 %v917, %v913
    %v1158 = vpack.c.b16 %v918, %v914
    %v1159 = vpack.c.b16 %v919, %v915
    %v1160 = vpack.c.b16 %v924, %v920
    %v1161 = vpack.c.b16 %v925, %v921
    %v1162 = vpack.c.b16 %v926, %v922
    %v1163 = vpack.c.b16 %v927, %v923
    %v1164 = vpack.c.b16 %v932, %v928
    %v1165 = vpack.c.b16 %v933, %v929
    %v1166 = vpack.c.b16 %v934, %v930
    %v1167 = vpack.c.b16 %v935, %v931
    %v1168 = vpack.c.b16 %v940, %v936
    %v1169 = vpack.c.b16 %v941, %v937
    %v1170 = vpack.c.b16 %v942, %v938
    %v1171 = vpack.c.b16 %v943, %v939
    %v1172 = vpack.c.b16 %v948, %v944
    %v1173 = vpack.c.b16 %v949, %v945
    %v1174 = vpack.c.b16 %v950, %v946
    %v1175 = vpack.c.b16 %v951, %v947
    %v1176 = vpack.c.b16 %v956, %v952
    %v1177 = vpack.c.b16 %v957, %v953
    %v1178 = vpack.c.b16 %v958, %v954
    %v1179 = vpack.c.b16 %v959, %v955
    %v1180 = vpack.c.b16 %v964, %v960
    %v1181 = vpack.c.b16 %v965, %v961
    %v1182 = vpack.c.b16 %v966, %v962
    %v1183 = vpack.c.b16 %v967, %v963
    %v1184 = vpack.c.b16 %v972, %v968
    %v1185 = vpack.c.b16 %v973, %v969
    %v1186 = vpack.c.b16 %v974, %v970
    %v1187 = vpack.c.b16 %v975, %v971
    %v1188 = vpack.c.b16 %v980, %v976
    %v1189 = vpack.c.b16 %v981, %v977
    %v1190 = vpack.c.b16 %v982, %v978
    %v1191 = vpack.c.b16 %v983, %v979
    %v1192 = vpack.c.b16 %v988, %v984
    %v1193 = vpack.c.b16 %v989, %v985
    %v1194 = vpack.c.b16 %v990, %v986
    %v1195 = vpack.c.b16 %v991, %v987
    %v1196 = vpack.c.b16 %v996, %v992
    %v1197 = vpack.c.b16 %v997, %v993
    %v1198 = vpack.c.b16 %v998, %v994
    %v1199 = vpack.c.b16 %v999, %v995
    %v1200 = vpack.c.b16 %v1004, %v1000
    %v1201 = vpack.c.b16 %v1005, %v1001
    %v1202 = vpack.c.b16 %v1006, %v1002
    %v1203 = vpack.c.b16 %v1007, %v1003
    %v1204 = vpack.c.b16 %v1012, %v1008
    %v1205 = vpack.c.b16 %v1013, %v1009
    %v1206 = vpack.c.b16 %v1014, %v1010
    %v1207 = vpack.c.b16 %v1015, %v1011
    %v1208 = vpack.c.b16 %v1020, %v1016
    %v1209 = vpack.c.b16 %v1021, %v1017
    %v1210 = vpack.c.b16 %v1022, %v1018
    %v1211 = vpack.c.b16 %v1023, %v1019
    %v1212 = vpack.c.b16 %v1028, %v1024
    %v1213 = vpack.c.b16 %v1029, %v1025
    %v1214 = vpack.c.b16 %v1030, %v1026
    %v1215 = vpack.c.b16 %v1031, %v1027
    %v1216 = vpack.c.b16 %v1036, %v1032
    %v1217 = vpack.c.b16 %v1037, %v1033
    %v1218 = vpack.c.b16 %v1038, %v1034
    %v1219 = vpack.c.b16 %v1039, %v1035
    %v1220 = vpack.c.b16 %v1044, %v1040
    %v1221 = vpack.c.b16 %v1045, %v1041
    %v1222 = vpack.c.b16 %v1046, %v1042
    %v1223 = vpack.c.b16 %v1047, %v1043
    %v1224 = vpack.c.b16 %v1052, %v1048
    %v1225 = vpack.c.b16 %v1053, %v1049
    %v1226 = vpack.c.b16 %v1054, %v1050
    %v1227 = vpack.c.b16 %v1055, %v1051
    %v1228 = vpack.c.b16 %v1060, %v1056
    %v1229 = vpack.c.b16 %v1061, %v1057
    %v1230 = vpack.c.b16 %v1062, %v1058
    %v1231 = vpack.c.b16 %v1063, %v1059
    %v1232 = vpack.c.b16 %v1068, %v1064
    %v1233 = vpack.c.b16 %v1069, %v1065
    %v1234 = vpack.c.b16 %v1070, %v1066
    %v1235 = vpack.c.b16 %v1071, %v1067
    %v1236 = vpack.c.b16 %v1076, %v1072
    %v1237 = vpack.c.b16 %v1077, %v1073
    %v1238 = vpack.c.b16 %v1078, %v1074
    %v1239 = vpack.c.b16 %v1079, %v1075
    %v1240 = vpack.c.b16 %v1084, %v1080
    %v1241 = vpack.c.b16 %v1085, %v1081
    %v1242 = vpack.c.b16 %v1086, %v1082
    %v1243 = vpack.c.b16 %v1087, %v1083
    %v1244 = vpack.c.b16 %v1092, %v1088
    %v1245 = vpack.c.b16 %v1093, %v1089
    %v1246 = vpack.c.b16 %v1094, %v1090
    %v1247 = vpack.c.b16 %v1095, %v1091
    %v1248 = vpack.c.b16 %v1100, %v1096
    %v1249 = vpack.c.b16 %v1101, %v1097
    %v1250 = vpack.c.b16 %v1102, %v1098
    %v1251 = vpack.c.b16 %v1103, %v1099
    %v1252 = vpack.c.b16 %v1108, %v1104
    %v1253 = vpack.c.b16 %v1109, %v1105
    %v1254 = vpack.c.b16 %v1110, %v1106
    %v1255 = vpack.c.b16 %v1111, %v1107
    %v1256 = vpack.c.b16 %v1116, %v1112
    %v1257 = vpack.c.b16 %v1117, %v1113
    %v1258 = vpack.c.b16 %v1118, %v1114
    %v1259 = vpack.c.b16 %v1119, %v1115
    %v1260 = vpack.c.b16 %v1124, %v1120
    %v1261 = vpack.c.b16 %v1125, %v1121
    %v1262 = vpack.c.b16 %v1126, %v1122
    %v1263 = vpack.c.b16 %v1127, %v1123
    %v1264 = vpack.c.b16 %v1132, %v1128
    %v1265 = vpack.c.b16 %v1133, %v1129
    %v1266 = vpack.c.b16 %v1134, %v1130
    %v1267 = vpack.c.b16 %v1135, %v1131
    %v1268 = vpack.c.b16 %v1140, %v1136
    %v1269 = vpack.c.b16 %v1141, %v1137
    %v1270 = vpack.c.b16 %v1142, %v1138
    %v1271 = vpack.c.b16 %v1143, %v1139
    %1400 = vmatprep.subr.bf16.mxu0 %v1173
    %1401 = vmatpush1.bf16.msra.mxu0 %v1172
    %1402 = vmatprep.subr.bf16.mxu0 %v1169
    %1403 = vmatpush1.bf16.msra.mxu0 %v1168
    %1404 = vmatprep.subr.bf16.mxu0 %v1165
    %1405 = vmatpush1.bf16.msra.mxu0 %v1164
    %1406 = vmatprep.subr.bf16.mxu0 %v1161
    %1407 = vmatpush1.bf16.msra.mxu0 %v1160
    %1408 = vmatprep.subr.bf16.mxu0 %v1157
    %1409 = vmatpush1.bf16.msra.mxu0 %v1156
    %1410 = vmatprep.subr.bf16.mxu0 %v1153
    %1411 = vmatpush1.bf16.msra.mxu0 %v1152
    %1412 = vmatprep.subr.bf16.mxu0 %v1149
    %1413 = vmatpush1.bf16.msra.mxu0 %v1148
    %1414 = vmatprep.subr.bf16.mxu0 %v1145
    %1415 = vmatpush1.bf16.msra.mxu0 %v1144
    %1416 = vmatprep.subr.bf16.mxu0 %v1205
    %1417 = vmatpush2.bf16.msra.mxu0 %v1204
    %1418 = vmatprep.subr.bf16.mxu0 %v1201
    %1419 = vmatpush2.bf16.msra.mxu0 %v1200
    %1420 = vmatprep.subr.bf16.mxu0 %v1197
    %1421 = vmatpush2.bf16.msra.mxu0 %v1196
    %1422 = vmatprep.subr.bf16.mxu0 %v1193
    %1423 = vmatpush2.bf16.msra.mxu0 %v1192
    %1424 = vmatprep.subr.bf16.mxu0 %v1189
    %1425 = vmatpush2.bf16.msra.mxu0 %v1188
    %1426 = vmatprep.subr.bf16.mxu0 %v1185
    %1427 = vmatpush2.bf16.msra.mxu0 %v1184
    %1428 = vmatprep.subr.bf16.mxu0 %v1181
    %1429 = vmatpush2.bf16.msra.mxu0 %v1180
    %1430 = vmatprep.subr.bf16.mxu0 %v1177
    %1431 = vmatpush2.bf16.msra.mxu0 %v1176
    %1432 = vmatprep.mubr.bf16.mxu0 %v607
    %1433 = vmatmul.mubr.bf16.gmra.mxu0 %v606
    %v1434 = vpop.f32.mrf.mxu0
    %v1435 = vadd.f32 %v743, %v1434
    %v1436 = vpop.f32.mrf.mxu0
    %v1437 = vadd.f32 %v747, %v1436
    %v1438 = vpop.f32.mrf.mxu0
    %v1439 = vpop.f32.mrf.mxu0
    %1440 = vdwg.mxu0
    %1441 = vmatprep.subr.bf16.mxu0 %v1237
    %1442 = vmatpush1.bf16.msra.mxu0 %v1236
    %1443 = vmatprep.subr.bf16.mxu0 %v1233
    %1444 = vmatpush1.bf16.msra.mxu0 %v1232
    %1445 = vmatprep.subr.bf16.mxu0 %v1229
    %1446 = vmatpush1.bf16.msra.mxu0 %v1228
    %1447 = vmatprep.subr.bf16.mxu0 %v1225
    %1448 = vmatpush1.bf16.msra.mxu0 %v1224
    %1449 = vmatprep.subr.bf16.mxu0 %v1221
    %1450 = vmatpush1.bf16.msra.mxu0 %v1220
    %1451 = vmatprep.subr.bf16.mxu0 %v1217
    %1452 = vmatpush1.bf16.msra.mxu0 %v1216
    %1453 = vmatprep.subr.bf16.mxu0 %v1213
    %1454 = vmatpush1.bf16.msra.mxu0 %v1212
    %1455 = vmatprep.subr.bf16.mxu0 %v1209
    %1456 = vmatpush1.bf16.msra.mxu0 %v1208
    %1457 = vmatprep.subr.bf16.mxu0 %v1269
    %1458 = vmatpush2.bf16.msra.mxu0 %v1268
    %1459 = vmatprep.subr.bf16.mxu0 %v1265
    %1460 = vmatpush2.bf16.msra.mxu0 %v1264
    %1461 = vmatprep.subr.bf16.mxu0 %v1261
    %1462 = vmatpush2.bf16.msra.mxu0 %v1260
    %1463 = vmatprep.subr.bf16.mxu0 %v1257
    %1464 = vmatpush2.bf16.msra.mxu0 %v1256
    %1465 = vmatprep.subr.bf16.mxu0 %v1253
    %1466 = vmatpush2.bf16.msra.mxu0 %v1252
    %1467 = vmatprep.subr.bf16.mxu0 %v1249
    %1468 = vmatpush2.bf16.msra.mxu0 %v1248
    %1469 = vmatprep.subr.bf16.mxu0 %v1245
    %1470 = vmatpush2.bf16.msra.mxu0 %v1244
    %1471 = vmatprep.subr.bf16.mxu0 %v1241
    %1472 = vmatpush2.bf16.msra.mxu0 %v1240
    %1473 = vmatprep.mubr.bf16.mxu0 %v609
    %1474 = vmatmul.mubr.bf16.gmra.mxu0 %v608
    %v1475 = vpop.f32.mrf.mxu0
    %v1476 = vadd.f32 %v1435, %v1475
    %v1477 = vpop.f32.mrf.mxu0
    %v1478 = vadd.f32 %v1437, %v1477
    %v1479 = vpop.f32.mrf.mxu0
    %v1480 = vpop.f32.mrf.mxu0
    %1481 = vdwg.mxu0
    %1482 = vmatprep.subr.bf16.mxu0 %v1175
    %1483 = vmatpush1.bf16.msra.mxu0 %v1174
    %1484 = vmatprep.subr.bf16.mxu0 %v1171
    %1485 = vmatpush1.bf16.msra.mxu0 %v1170
    %1486 = vmatprep.subr.bf16.mxu0 %v1167
    %1487 = vmatpush1.bf16.msra.mxu0 %v1166
    %1488 = vmatprep.subr.bf16.mxu0 %v1163
    %1489 = vmatpush1.bf16.msra.mxu0 %v1162
    %1490 = vmatprep.subr.bf16.mxu0 %v1159
    %1491 = vmatpush1.bf16.msra.mxu0 %v1158
    %1492 = vmatprep.subr.bf16.mxu0 %v1155
    %1493 = vmatpush1.bf16.msra.mxu0 %v1154
    %1494 = vmatprep.subr.bf16.mxu0 %v1151
    %1495 = vmatpush1.bf16.msra.mxu0 %v1150
    %1496 = vmatprep.subr.bf16.mxu0 %v1147
    %1497 = vmatpush1.bf16.msra.mxu0 %v1146
    %1498 = vmatprep.subr.bf16.mxu0 %v1207
    %1499 = vmatpush2.bf16.msra.mxu0 %v1206
    %1500 = vmatprep.subr.bf16.mxu0 %v1203
    %1501 = vmatpush2.bf16.msra.mxu0 %v1202
    %1502 = vmatprep.subr.bf16.mxu0 %v1199
    %1503 = vmatpush2.bf16.msra.mxu0 %v1198
    %1504 = vmatprep.subr.bf16.mxu0 %v1195
    %1505 = vmatpush2.bf16.msra.mxu0 %v1194
    %1506 = vmatprep.subr.bf16.mxu0 %v1191
    %1507 = vmatpush2.bf16.msra.mxu0 %v1190
    %1508 = vmatprep.subr.bf16.mxu0 %v1187
    %1509 = vmatpush2.bf16.msra.mxu0 %v1186
    %1510 = vmatprep.subr.bf16.mxu0 %v1183
    %1511 = vmatpush2.bf16.msra.mxu0 %v1182
    %1512 = vmatprep.subr.bf16.mxu0 %v1179
    %1513 = vmatpush2.bf16.msra.mxu0 %v1178
    %1514 = vmatprep.mubr.bf16.mxu0 %v607
    %1515 = vmatmul.mubr.bf16.gmra.mxu0 %v606
    %v1516 = vpop.f32.mrf.mxu0
    %v1517 = vadd.f32 %v751, %v1516
    %v1518 = vpop.f32.mrf.mxu0
    %v1519 = vadd.f32 %v755, %v1518
    %v1520 = vpop.f32.mrf.mxu0
    %v1521 = vpop.f32.mrf.mxu0
    %1522 = vdwg.mxu0
    %1523 = vmatprep.subr.bf16.mxu0 %v1239
    %1524 = vmatpush1.bf16.msra.mxu0 %v1238
    %1525 = vmatprep.subr.bf16.mxu0 %v1235
    %1526 = vmatpush1.bf16.msra.mxu0 %v1234
    %1527 = vmatprep.subr.bf16.mxu0 %v1231
    %1528 = vmatpush1.bf16.msra.mxu0 %v1230
    %1529 = vmatprep.subr.bf16.mxu0 %v1227
    %1530 = vmatpush1.bf16.msra.mxu0 %v1226
    %1531 = vmatprep.subr.bf16.mxu0 %v1223
    %1532 = vmatpush1.bf16.msra.mxu0 %v1222
    %1533 = vmatprep.subr.bf16.mxu0 %v1219
    %1534 = vmatpush1.bf16.msra.mxu0 %v1218
    %1535 = vmatprep.subr.bf16.mxu0 %v1215
    %1536 = vmatpush1.bf16.msra.mxu0 %v1214
    %1537 = vmatprep.subr.bf16.mxu0 %v1211
    %1538 = vmatpush1.bf16.msra.mxu0 %v1210
    %1539 = vmatprep.subr.bf16.mxu0 %v1271
    %1540 = vmatpush2.bf16.msra.mxu0 %v1270
    %1541 = vmatprep.subr.bf16.mxu0 %v1267
    %1542 = vmatpush2.bf16.msra.mxu0 %v1266
    %1543 = vmatprep.subr.bf16.mxu0 %v1263
    %1544 = vmatpush2.bf16.msra.mxu0 %v1262
    %1545 = vmatprep.subr.bf16.mxu0 %v1259
    %1546 = vmatpush2.bf16.msra.mxu0 %v1258
    %1547 = vmatprep.subr.bf16.mxu0 %v1255
    %1548 = vmatpush2.bf16.msra.mxu0 %v1254
    %1549 = vmatprep.subr.bf16.mxu0 %v1251
    %1550 = vmatpush2.bf16.msra.mxu0 %v1250
    %1551 = vmatprep.subr.bf16.mxu0 %v1247
    %1552 = vmatpush2.bf16.msra.mxu0 %v1246
    %1553 = vmatprep.subr.bf16.mxu0 %v1243
    %1554 = vmatpush2.bf16.msra.mxu0 %v1242
    %1555 = vmatprep.mubr.bf16.mxu0 %v609
    %1556 = vmatmul.mubr.bf16.gmra.mxu0 %v608
    %v1557 = vpop.f32.mrf.mxu0
    %v1558 = vadd.f32 %v1517, %v1557
    %v1559 = vpop.f32.mrf.mxu0
    %v1560 = vadd.f32 %v1519, %v1559
    %v1561 = vpop.f32.mrf.mxu0
    %v1562 = vpop.f32.mrf.mxu0
    %1563 = vdwg.mxu0
    %vm1564 = vcmp.gt.f32.partialorder %v1476, 0.0
    %vm1565 = vcmp.gt.f32.partialorder %v1478, 0.0
    %vm1566 = vcmp.gt.f32.partialorder %v1558, 0.0
    %vm1567 = vcmp.gt.f32.partialorder %v1560, 0.0
    %v1568 = vmul.f32 %v1476, 0.2
    %v1569 = vmul.f32 %v1478, 0.2
    %v1570 = vmul.f32 %v1558, 0.2
    %v1571 = vmul.f32 %v1560, 0.2
    %v1572 = vsel %vm1564, %v1476, %v1568
    %v1573 = vsel %vm1565, %v1478, %v1569
    %v1574 = vsel %vm1566, %v1558, %v1570
    %v1575 = vsel %vm1567, %v1560, %v1571
    %v1576 = vpack.c.bf16 %v1572, %v1572
    %v1577 = vpack.c.bf16 %v1573, %v1573
    %v1578 = vpack.c.bf16 %v1574, %v1574
    %v1579 = vpack.c.bf16 %v1575, %v1575
    %v1580 = vld [vmem:[#allocation8] sm:$0xff]
    %v1581 = vld [vmem:[#allocation8 + $0x8] sm:$0xff]
    %v1582 = vld [vmem:[#allocation8 + $0x10] sm:$0xff]
    %v1583 = vld [vmem:[#allocation8 + $0x18] sm:$0xff]
    %v1584 = vld [vmem:[#allocation8 + $0x20] sm:$0xff]
    %v1585 = vld [vmem:[#allocation8 + $0x28] sm:$0xff]
    %v1586 = vld [vmem:[#allocation8 + $0x30] sm:$0xff]
    %v1587 = vld [vmem:[#allocation8 + $0x38] sm:$0xff]
    %v1588 = vld [vmem:[#allocation8 + $0x40] sm:$0xff]
    %v1589 = vld [vmem:[#allocation8 + $0x48] sm:$0xff]
    %v1590 = vld [vmem:[#allocation8 + $0x50] sm:$0xff]
    %v1591 = vld [vmem:[#allocation8 + $0x58] sm:$0xff]
    %v1592 = vld [vmem:[#allocation8 + $0x60] sm:$0xff]
    %v1593 = vld [vmem:[#allocation8 + $0x68] sm:$0xff]
    %v1594 = vld [vmem:[#allocation8 + $0x70] sm:$0xff]
    %v1595 = vld [vmem:[#allocation8 + $0x78] sm:$0xff]
    %v1596 = vld [vmem:[#allocation8 + $0x80] sm:$0xff]
    %v1597 = vld [vmem:[#allocation8 + $0x88] sm:$0xff]
    %v1598 = vld [vmem:[#allocation8 + $0x90] sm:$0xff]
    %v1599 = vld [vmem:[#allocation8 + $0x98] sm:$0xff]
    %v1600 = vld [vmem:[#allocation8 + $0xa0] sm:$0xff]
    %v1601 = vld [vmem:[#allocation8 + $0xa8] sm:$0xff]
    %v1602 = vld [vmem:[#allocation8 + $0xb0] sm:$0xff]
    %v1603 = vld [vmem:[#allocation8 + $0xb8] sm:$0xff]
    %v1604 = vld [vmem:[#allocation8 + $0xc0] sm:$0xff]
    %v1605 = vld [vmem:[#allocation8 + $0xc8] sm:$0xff]
    %v1606 = vld [vmem:[#allocation8 + $0xd0] sm:$0xff]
    %v1607 = vld [vmem:[#allocation8 + $0xd8] sm:$0xff]
    %v1608 = vld [vmem:[#allocation8 + $0xe0] sm:$0xff]
    %v1609 = vld [vmem:[#allocation8 + $0xe8] sm:$0xff]
    %v1610 = vld [vmem:[#allocation8 + $0xf0] sm:$0xff]
    %v1611 = vld [vmem:[#allocation8 + $0xf8] sm:$0xff]
    %v1612 = vld [vmem:[#allocation8 + $0x100] sm:$0xff]
    %v1613 = vld [vmem:[#allocation8 + $0x108] sm:$0xff]
    %v1614 = vld [vmem:[#allocation8 + $0x110] sm:$0xff]
    %v1615 = vld [vmem:[#allocation8 + $0x118] sm:$0xff]
    %v1616 = vld [vmem:[#allocation8 + $0x120] sm:$0xff]
    %v1617 = vld [vmem:[#allocation8 + $0x128] sm:$0xff]
    %v1618 = vld [vmem:[#allocation8 + $0x130] sm:$0xff]
    %v1619 = vld [vmem:[#allocation8 + $0x138] sm:$0xff]
    %v1620 = vld [vmem:[#allocation8 + $0x140] sm:$0xff]
    %v1621 = vld [vmem:[#allocation8 + $0x148] sm:$0xff]
    %v1622 = vld [vmem:[#allocation8 + $0x150] sm:$0xff]
    %v1623 = vld [vmem:[#allocation8 + $0x158] sm:$0xff]
    %v1624 = vld [vmem:[#allocation8 + $0x160] sm:$0xff]
    %v1625 = vld [vmem:[#allocation8 + $0x168] sm:$0xff]
    %v1626 = vld [vmem:[#allocation8 + $0x170] sm:$0xff]
    %v1627 = vld [vmem:[#allocation8 + $0x178] sm:$0xff]
    %v1628 = vld [vmem:[#allocation8 + $0x180] sm:$0xff]
    %v1629 = vld [vmem:[#allocation8 + $0x188] sm:$0xff]
    %v1630 = vld [vmem:[#allocation8 + $0x190] sm:$0xff]
    %v1631 = vld [vmem:[#allocation8 + $0x198] sm:$0xff]
    %v1632 = vld [vmem:[#allocation8 + $0x1a0] sm:$0xff]
    %v1633 = vld [vmem:[#allocation8 + $0x1a8] sm:$0xff]
    %v1634 = vld [vmem:[#allocation8 + $0x1b0] sm:$0xff]
    %v1635 = vld [vmem:[#allocation8 + $0x1b8] sm:$0xff]
    %v1636 = vld [vmem:[#allocation8 + $0x1c0] sm:$0xff]
    %v1637 = vld [vmem:[#allocation8 + $0x1c8] sm:$0xff]
    %v1638 = vld [vmem:[#allocation8 + $0x1d0] sm:$0xff]
    %v1639 = vld [vmem:[#allocation8 + $0x1d8] sm:$0xff]
    %v1640 = vld [vmem:[#allocation8 + $0x1e0] sm:$0xff]
    %v1641 = vld [vmem:[#allocation8 + $0x1e8] sm:$0xff]
    %v1642 = vld [vmem:[#allocation8 + $0x1f0] sm:$0xff]
    %v1643 = vld [vmem:[#allocation8 + $0x1f8] sm:$0xff]
    %v1644 = vld [vmem:[#allocation8 + $0x200] sm:$0xff]
    %v1645 = vld [vmem:[#allocation8 + $0x208] sm:$0xff]
    %v1646 = vld [vmem:[#allocation8 + $0x210] sm:$0xff]
    %v1647 = vld [vmem:[#allocation8 + $0x218] sm:$0xff]
    %v1648 = vld [vmem:[#allocation8 + $0x220] sm:$0xff]
    %v1649 = vld [vmem:[#allocation8 + $0x228] sm:$0xff]
    %v1650 = vld [vmem:[#allocation8 + $0x230] sm:$0xff]
    %v1651 = vld [vmem:[#allocation8 + $0x238] sm:$0xff]
    %v1652 = vld [vmem:[#allocation8 + $0x240] sm:$0xff]
    %v1653 = vld [vmem:[#allocation8 + $0x248] sm:$0xff]
    %v1654 = vld [vmem:[#allocation8 + $0x250] sm:$0xff]
    %v1655 = vld [vmem:[#allocation8 + $0x258] sm:$0xff]
    %v1656 = vld [vmem:[#allocation8 + $0x260] sm:$0xff]
    %v1657 = vld [vmem:[#allocation8 + $0x268] sm:$0xff]
    %v1658 = vld [vmem:[#allocation8 + $0x270] sm:$0xff]
    %v1659 = vld [vmem:[#allocation8 + $0x278] sm:$0xff]
    %v1660 = vld [vmem:[#allocation8 + $0x280] sm:$0xff]
    %v1661 = vld [vmem:[#allocation8 + $0x288] sm:$0xff]
    %v1662 = vld [vmem:[#allocation8 + $0x290] sm:$0xff]
    %v1663 = vld [vmem:[#allocation8 + $0x298] sm:$0xff]
    %v1664 = vld [vmem:[#allocation8 + $0x2a0] sm:$0xff]
    %v1665 = vld [vmem:[#allocation8 + $0x2a8] sm:$0xff]
    %v1666 = vld [vmem:[#allocation8 + $0x2b0] sm:$0xff]
    %v1667 = vld [vmem:[#allocation8 + $0x2b8] sm:$0xff]
    %v1668 = vld [vmem:[#allocation8 + $0x2c0] sm:$0xff]
    %v1669 = vld [vmem:[#allocation8 + $0x2c8] sm:$0xff]
    %v1670 = vld [vmem:[#allocation8 + $0x2d0] sm:$0xff]
    %v1671 = vld [vmem:[#allocation8 + $0x2d8] sm:$0xff]
    %v1672 = vld [vmem:[#allocation8 + $0x2e0] sm:$0xff]
    %v1673 = vld [vmem:[#allocation8 + $0x2e8] sm:$0xff]
    %v1674 = vld [vmem:[#allocation8 + $0x2f0] sm:$0xff]
    %v1675 = vld [vmem:[#allocation8 + $0x2f8] sm:$0xff]
    %v1676 = vld [vmem:[#allocation8 + $0x300] sm:$0xff]
    %v1677 = vld [vmem:[#allocation8 + $0x308] sm:$0xff]
    %v1678 = vld [vmem:[#allocation8 + $0x310] sm:$0xff]
    %v1679 = vld [vmem:[#allocation8 + $0x318] sm:$0xff]
    %v1680 = vld [vmem:[#allocation8 + $0x320] sm:$0xff]
    %v1681 = vld [vmem:[#allocation8 + $0x328] sm:$0xff]
    %v1682 = vld [vmem:[#allocation8 + $0x330] sm:$0xff]
    %v1683 = vld [vmem:[#allocation8 + $0x338] sm:$0xff]
    %v1684 = vld [vmem:[#allocation8 + $0x340] sm:$0xff]
    %v1685 = vld [vmem:[#allocation8 + $0x348] sm:$0xff]
    %v1686 = vld [vmem:[#allocation8 + $0x350] sm:$0xff]
    %v1687 = vld [vmem:[#allocation8 + $0x358] sm:$0xff]
    %v1688 = vld [vmem:[#allocation8 + $0x360] sm:$0xff]
    %v1689 = vld [vmem:[#allocation8 + $0x368] sm:$0xff]
    %v1690 = vld [vmem:[#allocation8 + $0x370] sm:$0xff]
    %v1691 = vld [vmem:[#allocation8 + $0x378] sm:$0xff]
    %v1692 = vld [vmem:[#allocation8 + $0x380] sm:$0xff]
    %v1693 = vld [vmem:[#allocation8 + $0x388] sm:$0xff]
    %v1694 = vld [vmem:[#allocation8 + $0x390] sm:$0xff]
    %v1695 = vld [vmem:[#allocation8 + $0x398] sm:$0xff]
    %v1696 = vld [vmem:[#allocation8 + $0x3a0] sm:$0xff]
    %v1697 = vld [vmem:[#allocation8 + $0x3a8] sm:$0xff]
    %v1698 = vld [vmem:[#allocation8 + $0x3b0] sm:$0xff]
    %v1699 = vld [vmem:[#allocation8 + $0x3b8] sm:$0xff]
    %v1700 = vld [vmem:[#allocation8 + $0x3c0] sm:$0xff]
    %v1701 = vld [vmem:[#allocation8 + $0x3c8] sm:$0xff]
    %v1702 = vld [vmem:[#allocation8 + $0x3d0] sm:$0xff]
    %v1703 = vld [vmem:[#allocation8 + $0x3d8] sm:$0xff]
    %v1704 = vld [vmem:[#allocation8 + $0x3e0] sm:$0xff]
    %v1705 = vld [vmem:[#allocation8 + $0x3e8] sm:$0xff]
    %v1706 = vld [vmem:[#allocation8 + $0x3f0] sm:$0xff]
    %v1707 = vld [vmem:[#allocation8 + $0x3f8] sm:$0xff]
    %v1708 = vld [vmem:[%s6] sm:$0xf]
    %v1710 = vlaneseq
    %v1711 = vshrl.u32 %v1710, 7
    %v1712 = vsub.s32 0, %v1711
    %v1713 = vrot.slane %v1708, %v1712
    %v1714 = vlaneseq
    %v1715 = vshrl.u32 %v1714, 7
    %v1716 = vsub.s32 1, %v1715
    %v1717 = vrot.slane %v1708, %v1716
    %v1718 = vlaneseq
    %v1719 = vshrl.u32 %v1718, 7
    %v1720 = vsub.s32 2, %v1719
    %v1721 = vrot.slane %v1708, %v1720
    %v1722 = vlaneseq
    %v1723 = vshrl.u32 %v1722, 7
    %v1724 = vsub.s32 3, %v1723
    %v1725 = vrot.slane %v1708, %v1724
    %v1858 = vunpack.c.l.b16 %v1580
    %v1859 = vunpack.c.h.b16 %v1580
    %v1860 = vunpack.c.l.b16 %v1581
    %v1861 = vunpack.c.h.b16 %v1581
    %v1862 = vunpack.c.l.b16 %v1582
    %v1863 = vunpack.c.h.b16 %v1582
    %v1864 = vunpack.c.l.b16 %v1583
    %v1865 = vunpack.c.h.b16 %v1583
    %v1866 = vunpack.c.l.b16 %v1584
    %v1867 = vunpack.c.h.b16 %v1584
    %v1868 = vunpack.c.l.b16 %v1585
    %v1869 = vunpack.c.h.b16 %v1585
    %v1870 = vunpack.c.l.b16 %v1586
    %v1871 = vunpack.c.h.b16 %v1586
    %v1872 = vunpack.c.l.b16 %v1587
    %v1873 = vunpack.c.h.b16 %v1587
    %v1874 = vunpack.c.l.b16 %v1588
    %v1875 = vunpack.c.h.b16 %v1588
    %v1876 = vunpack.c.l.b16 %v1589
    %v1877 = vunpack.c.h.b16 %v1589
    %v1878 = vunpack.c.l.b16 %v1590
    %v1879 = vunpack.c.h.b16 %v1590
    %v1880 = vunpack.c.l.b16 %v1591
    %v1881 = vunpack.c.h.b16 %v1591
    %v1882 = vunpack.c.l.b16 %v1592
    %v1883 = vunpack.c.h.b16 %v1592
    %v1884 = vunpack.c.l.b16 %v1593
    %v1885 = vunpack.c.h.b16 %v1593
    %v1886 = vunpack.c.l.b16 %v1594
    %v1887 = vunpack.c.h.b16 %v1594
    %v1888 = vunpack.c.l.b16 %v1595
    %v1889 = vunpack.c.h.b16 %v1595
    %v1890 = vunpack.c.l.b16 %v1596
    %v1891 = vunpack.c.h.b16 %v1596
    %v1892 = vunpack.c.l.b16 %v1597
    %v1893 = vunpack.c.h.b16 %v1597
    %v1894 = vunpack.c.l.b16 %v1598
    %v1895 = vunpack.c.h.b16 %v1598
    %v1896 = vunpack.c.l.b16 %v1599
    %v1897 = vunpack.c.h.b16 %v1599
    %v1898 = vunpack.c.l.b16 %v1600
    %v1899 = vunpack.c.h.b16 %v1600
    %v1900 = vunpack.c.l.b16 %v1601
    %v1901 = vunpack.c.h.b16 %v1601
    %v1902 = vunpack.c.l.b16 %v1602
    %v1903 = vunpack.c.h.b16 %v1602
    %v1904 = vunpack.c.l.b16 %v1603
    %v1905 = vunpack.c.h.b16 %v1603
    %v1906 = vunpack.c.l.b16 %v1604
    %v1907 = vunpack.c.h.b16 %v1604
    %v1908 = vunpack.c.l.b16 %v1605
    %v1909 = vunpack.c.h.b16 %v1605
    %v1910 = vunpack.c.l.b16 %v1606
    %v1911 = vunpack.c.h.b16 %v1606
    %v1912 = vunpack.c.l.b16 %v1607
    %v1913 = vunpack.c.h.b16 %v1607
    %v1914 = vunpack.c.l.b16 %v1608
    %v1915 = vunpack.c.h.b16 %v1608
    %v1916 = vunpack.c.l.b16 %v1609
    %v1917 = vunpack.c.h.b16 %v1609
    %v1918 = vunpack.c.l.b16 %v1610
    %v1919 = vunpack.c.h.b16 %v1610
    %v1920 = vunpack.c.l.b16 %v1611
    %v1921 = vunpack.c.h.b16 %v1611
    %v1922 = vunpack.c.l.b16 %v1612
    %v1923 = vunpack.c.h.b16 %v1612
    %v1924 = vunpack.c.l.b16 %v1613
    %v1925 = vunpack.c.h.b16 %v1613
    %v1926 = vunpack.c.l.b16 %v1614
    %v1927 = vunpack.c.h.b16 %v1614
    %v1928 = vunpack.c.l.b16 %v1615
    %v1929 = vunpack.c.h.b16 %v1615
    %v1930 = vunpack.c.l.b16 %v1616
    %v1931 = vunpack.c.h.b16 %v1616
    %v1932 = vunpack.c.l.b16 %v1617
    %v1933 = vunpack.c.h.b16 %v1617
    %v1934 = vunpack.c.l.b16 %v1618
    %v1935 = vunpack.c.h.b16 %v1618
    %v1936 = vunpack.c.l.b16 %v1619
    %v1937 = vunpack.c.h.b16 %v1619
    %v1938 = vunpack.c.l.b16 %v1620
    %v1939 = vunpack.c.h.b16 %v1620
    %v1940 = vunpack.c.l.b16 %v1621
    %v1941 = vunpack.c.h.b16 %v1621
    %v1942 = vunpack.c.l.b16 %v1622
    %v1943 = vunpack.c.h.b16 %v1622
    %v1944 = vunpack.c.l.b16 %v1623
    %v1945 = vunpack.c.h.b16 %v1623
    %v1946 = vunpack.c.l.b16 %v1624
    %v1947 = vunpack.c.h.b16 %v1624
    %v1948 = vunpack.c.l.b16 %v1625
    %v1949 = vunpack.c.h.b16 %v1625
    %v1950 = vunpack.c.l.b16 %v1626
    %v1951 = vunpack.c.h.b16 %v1626
    %v1952 = vunpack.c.l.b16 %v1627
    %v1953 = vunpack.c.h.b16 %v1627
    %v1954 = vunpack.c.l.b16 %v1628
    %v1955 = vunpack.c.h.b16 %v1628
    %v1956 = vunpack.c.l.b16 %v1629
    %v1957 = vunpack.c.h.b16 %v1629
    %v1958 = vunpack.c.l.b16 %v1630
    %v1959 = vunpack.c.h.b16 %v1630
    %v1960 = vunpack.c.l.b16 %v1631
    %v1961 = vunpack.c.h.b16 %v1631
    %v1962 = vunpack.c.l.b16 %v1632
    %v1963 = vunpack.c.h.b16 %v1632
    %v1964 = vunpack.c.l.b16 %v1633
    %v1965 = vunpack.c.h.b16 %v1633
    %v1966 = vunpack.c.l.b16 %v1634
    %v1967 = vunpack.c.h.b16 %v1634
    %v1968 = vunpack.c.l.b16 %v1635
    %v1969 = vunpack.c.h.b16 %v1635
    %v1970 = vunpack.c.l.b16 %v1636
    %v1971 = vunpack.c.h.b16 %v1636
    %v1972 = vunpack.c.l.b16 %v1637
    %v1973 = vunpack.c.h.b16 %v1637
    %v1974 = vunpack.c.l.b16 %v1638
    %v1975 = vunpack.c.h.b16 %v1638
    %v1976 = vunpack.c.l.b16 %v1639
    %v1977 = vunpack.c.h.b16 %v1639
    %v1978 = vunpack.c.l.b16 %v1640
    %v1979 = vunpack.c.h.b16 %v1640
    %v1980 = vunpack.c.l.b16 %v1641
    %v1981 = vunpack.c.h.b16 %v1641
    %v1982 = vunpack.c.l.b16 %v1642
    %v1983 = vunpack.c.h.b16 %v1642
    %v1984 = vunpack.c.l.b16 %v1643
    %v1985 = vunpack.c.h.b16 %v1643
    %v1986 = vunpack.c.l.b16 %v1644
    %v1987 = vunpack.c.h.b16 %v1644
    %v1988 = vunpack.c.l.b16 %v1645
    %v1989 = vunpack.c.h.b16 %v1645
    %v1990 = vunpack.c.l.b16 %v1646
    %v1991 = vunpack.c.h.b16 %v1646
    %v1992 = vunpack.c.l.b16 %v1647
    %v1993 = vunpack.c.h.b16 %v1647
    %v1994 = vunpack.c.l.b16 %v1648
    %v1995 = vunpack.c.h.b16 %v1648
    %v1996 = vunpack.c.l.b16 %v1649
    %v1997 = vunpack.c.h.b16 %v1649
    %v1998 = vunpack.c.l.b16 %v1650
    %v1999 = vunpack.c.h.b16 %v1650
    %v2000 = vunpack.c.l.b16 %v1651
    %v2001 = vunpack.c.h.b16 %v1651
    %v2002 = vunpack.c.l.b16 %v1652
    %v2003 = vunpack.c.h.b16 %v1652
    %v2004 = vunpack.c.l.b16 %v1653
    %v2005 = vunpack.c.h.b16 %v1653
    %v2006 = vunpack.c.l.b16 %v1654
    %v2007 = vunpack.c.h.b16 %v1654
    %v2008 = vunpack.c.l.b16 %v1655
    %v2009 = vunpack.c.h.b16 %v1655
    %v2010 = vunpack.c.l.b16 %v1656
    %v2011 = vunpack.c.h.b16 %v1656
    %v2012 = vunpack.c.l.b16 %v1657
    %v2013 = vunpack.c.h.b16 %v1657
    %v2014 = vunpack.c.l.b16 %v1658
    %v2015 = vunpack.c.h.b16 %v1658
    %v2016 = vunpack.c.l.b16 %v1659
    %v2017 = vunpack.c.h.b16 %v1659
    %v2018 = vunpack.c.l.b16 %v1660
    %v2019 = vunpack.c.h.b16 %v1660
    %v2020 = vunpack.c.l.b16 %v1661
    %v2021 = vunpack.c.h.b16 %v1661
    %v2022 = vunpack.c.l.b16 %v1662
    %v2023 = vunpack.c.h.b16 %v1662
    %v2024 = vunpack.c.l.b16 %v1663
    %v2025 = vunpack.c.h.b16 %v1663
    %v2026 = vunpack.c.l.b16 %v1664
    %v2027 = vunpack.c.h.b16 %v1664
    %v2028 = vunpack.c.l.b16 %v1665
    %v2029 = vunpack.c.h.b16 %v1665
    %v2030 = vunpack.c.l.b16 %v1666
    %v2031 = vunpack.c.h.b16 %v1666
    %v2032 = vunpack.c.l.b16 %v1667
    %v2033 = vunpack.c.h.b16 %v1667
    %v2034 = vunpack.c.l.b16 %v1668
    %v2035 = vunpack.c.h.b16 %v1668
    %v2036 = vunpack.c.l.b16 %v1669
    %v2037 = vunpack.c.h.b16 %v1669
    %v2038 = vunpack.c.l.b16 %v1670
    %v2039 = vunpack.c.h.b16 %v1670
    %v2040 = vunpack.c.l.b16 %v1671
    %v2041 = vunpack.c.h.b16 %v1671
    %v2042 = vunpack.c.l.b16 %v1672
    %v2043 = vunpack.c.h.b16 %v1672
    %v2044 = vunpack.c.l.b16 %v1673
    %v2045 = vunpack.c.h.b16 %v1673
    %v2046 = vunpack.c.l.b16 %v1674
    %v2047 = vunpack.c.h.b16 %v1674
    %v2048 = vunpack.c.l.b16 %v1675
    %v2049 = vunpack.c.h.b16 %v1675
    %v2050 = vunpack.c.l.b16 %v1676
    %v2051 = vunpack.c.h.b16 %v1676
    %v2052 = vunpack.c.l.b16 %v1677
    %v2053 = vunpack.c.h.b16 %v1677
    %v2054 = vunpack.c.l.b16 %v1678
    %v2055 = vunpack.c.h.b16 %v1678
    %v2056 = vunpack.c.l.b16 %v1679
    %v2057 = vunpack.c.h.b16 %v1679
    %v2058 = vunpack.c.l.b16 %v1680
    %v2059 = vunpack.c.h.b16 %v1680
    %v2060 = vunpack.c.l.b16 %v1681
    %v2061 = vunpack.c.h.b16 %v1681
    %v2062 = vunpack.c.l.b16 %v1682
    %v2063 = vunpack.c.h.b16 %v1682
    %v2064 = vunpack.c.l.b16 %v1683
    %v2065 = vunpack.c.h.b16 %v1683
    %v2066 = vunpack.c.l.b16 %v1684
    %v2067 = vunpack.c.h.b16 %v1684
    %v2068 = vunpack.c.l.b16 %v1685
    %v2069 = vunpack.c.h.b16 %v1685
    %v2070 = vunpack.c.l.b16 %v1686
    %v2071 = vunpack.c.h.b16 %v1686
    %v2072 = vunpack.c.l.b16 %v1687
    %v2073 = vunpack.c.h.b16 %v1687
    %v2074 = vunpack.c.l.b16 %v1688
    %v2075 = vunpack.c.h.b16 %v1688
    %v2076 = vunpack.c.l.b16 %v1689
    %v2077 = vunpack.c.h.b16 %v1689
    %v2078 = vunpack.c.l.b16 %v1690
    %v2079 = vunpack.c.h.b16 %v1690
    %v2080 = vunpack.c.l.b16 %v1691
    %v2081 = vunpack.c.h.b16 %v1691
    %v2082 = vunpack.c.l.b16 %v1692
    %v2083 = vunpack.c.h.b16 %v1692
    %v2084 = vunpack.c.l.b16 %v1693
    %v2085 = vunpack.c.h.b16 %v1693
    %v2086 = vunpack.c.l.b16 %v1694
    %v2087 = vunpack.c.h.b16 %v1694
    %v2088 = vunpack.c.l.b16 %v1695
    %v2089 = vunpack.c.h.b16 %v1695
    %v2090 = vunpack.c.l.b16 %v1696
    %v2091 = vunpack.c.h.b16 %v1696
    %v2092 = vunpack.c.l.b16 %v1697
    %v2093 = vunpack.c.h.b16 %v1697
    %v2094 = vunpack.c.l.b16 %v1698
    %v2095 = vunpack.c.h.b16 %v1698
    %v2096 = vunpack.c.l.b16 %v1699
    %v2097 = vunpack.c.h.b16 %v1699
    %v2098 = vunpack.c.l.b16 %v1700
    %v2099 = vunpack.c.h.b16 %v1700
    %v2100 = vunpack.c.l.b16 %v1701
    %v2101 = vunpack.c.h.b16 %v1701
    %v2102 = vunpack.c.l.b16 %v1702
    %v2103 = vunpack.c.h.b16 %v1702
    %v2104 = vunpack.c.l.b16 %v1703
    %v2105 = vunpack.c.h.b16 %v1703
    %v2106 = vunpack.c.l.b16 %v1704
    %v2107 = vunpack.c.h.b16 %v1704
    %v2108 = vunpack.c.l.b16 %v1705
    %v2109 = vunpack.c.h.b16 %v1705
    %v2110 = vunpack.c.l.b16 %v1706
    %v2111 = vunpack.c.h.b16 %v1706
    %v2112 = vunpack.c.l.b16 %v1707
    %v2113 = vunpack.c.h.b16 %v1707
    %v2114 = vpack.c.b16 %v1862, %v1858
    %v2115 = vpack.c.b16 %v1863, %v1859
    %v2116 = vpack.c.b16 %v1864, %v1860
    %v2117 = vpack.c.b16 %v1865, %v1861
    %v2118 = vpack.c.b16 %v1870, %v1866
    %v2119 = vpack.c.b16 %v1871, %v1867
    %v2120 = vpack.c.b16 %v1872, %v1868
    %v2121 = vpack.c.b16 %v1873, %v1869
    %v2122 = vpack.c.b16 %v1878, %v1874
    %v2123 = vpack.c.b16 %v1879, %v1875
    %v2124 = vpack.c.b16 %v1880, %v1876
    %v2125 = vpack.c.b16 %v1881, %v1877
    %v2126 = vpack.c.b16 %v1886, %v1882
    %v2127 = vpack.c.b16 %v1887, %v1883
    %v2128 = vpack.c.b16 %v1888, %v1884
    %v2129 = vpack.c.b16 %v1889, %v1885
    %v2130 = vpack.c.b16 %v1894, %v1890
    %v2131 = vpack.c.b16 %v1895, %v1891
    %v2132 = vpack.c.b16 %v1896, %v1892
    %v2133 = vpack.c.b16 %v1897, %v1893
    %v2134 = vpack.c.b16 %v1902, %v1898
    %v2135 = vpack.c.b16 %v1903, %v1899
    %v2136 = vpack.c.b16 %v1904, %v1900
    %v2137 = vpack.c.b16 %v1905, %v1901
    %v2138 = vpack.c.b16 %v1910, %v1906
    %v2139 = vpack.c.b16 %v1911, %v1907
    %v2140 = vpack.c.b16 %v1912, %v1908
    %v2141 = vpack.c.b16 %v1913, %v1909
    %v2142 = vpack.c.b16 %v1918, %v1914
    %v2143 = vpack.c.b16 %v1919, %v1915
    %v2144 = vpack.c.b16 %v1920, %v1916
    %v2145 = vpack.c.b16 %v1921, %v1917
    %v2146 = vpack.c.b16 %v1926, %v1922
    %v2147 = vpack.c.b16 %v1927, %v1923
    %v2148 = vpack.c.b16 %v1928, %v1924
    %v2149 = vpack.c.b16 %v1929, %v1925
    %v2150 = vpack.c.b16 %v1934, %v1930
    %v2151 = vpack.c.b16 %v1935, %v1931
    %v2152 = vpack.c.b16 %v1936, %v1932
    %v2153 = vpack.c.b16 %v1937, %v1933
    %v2154 = vpack.c.b16 %v1942, %v1938
    %v2155 = vpack.c.b16 %v1943, %v1939
    %v2156 = vpack.c.b16 %v1944, %v1940
    %v2157 = vpack.c.b16 %v1945, %v1941
    %v2158 = vpack.c.b16 %v1950, %v1946
    %v2159 = vpack.c.b16 %v1951, %v1947
    %v2160 = vpack.c.b16 %v1952, %v1948
    %v2161 = vpack.c.b16 %v1953, %v1949
    %v2162 = vpack.c.b16 %v1958, %v1954
    %v2163 = vpack.c.b16 %v1959, %v1955
    %v2164 = vpack.c.b16 %v1960, %v1956
    %v2165 = vpack.c.b16 %v1961, %v1957
    %v2166 = vpack.c.b16 %v1966, %v1962
    %v2167 = vpack.c.b16 %v1967, %v1963
    %v2168 = vpack.c.b16 %v1968, %v1964
    %v2169 = vpack.c.b16 %v1969, %v1965
    %v2170 = vpack.c.b16 %v1974, %v1970
    %v2171 = vpack.c.b16 %v1975, %v1971
    %v2172 = vpack.c.b16 %v1976, %v1972
    %v2173 = vpack.c.b16 %v1977, %v1973
    %v2174 = vpack.c.b16 %v1982, %v1978
    %v2175 = vpack.c.b16 %v1983, %v1979
    %v2176 = vpack.c.b16 %v1984, %v1980
    %v2177 = vpack.c.b16 %v1985, %v1981
    %v2178 = vpack.c.b16 %v1990, %v1986
    %v2179 = vpack.c.b16 %v1991, %v1987
    %v2180 = vpack.c.b16 %v1992, %v1988
    %v2181 = vpack.c.b16 %v1993, %v1989
    %v2182 = vpack.c.b16 %v1998, %v1994
    %v2183 = vpack.c.b16 %v1999, %v1995
    %v2184 = vpack.c.b16 %v2000, %v1996
    %v2185 = vpack.c.b16 %v2001, %v1997
    %v2186 = vpack.c.b16 %v2006, %v2002
    %v2187 = vpack.c.b16 %v2007, %v2003
    %v2188 = vpack.c.b16 %v2008, %v2004
    %v2189 = vpack.c.b16 %v2009, %v2005
    %v2190 = vpack.c.b16 %v2014, %v2010
    %v2191 = vpack.c.b16 %v2015, %v2011
    %v2192 = vpack.c.b16 %v2016, %v2012
    %v2193 = vpack.c.b16 %v2017, %v2013
    %v2194 = vpack.c.b16 %v2022, %v2018
    %v2195 = vpack.c.b16 %v2023, %v2019
    %v2196 = vpack.c.b16 %v2024, %v2020
    %v2197 = vpack.c.b16 %v2025, %v2021
    %v2198 = vpack.c.b16 %v2030, %v2026
    %v2199 = vpack.c.b16 %v2031, %v2027
    %v2200 = vpack.c.b16 %v2032, %v2028
    %v2201 = vpack.c.b16 %v2033, %v2029
    %v2202 = vpack.c.b16 %v2038, %v2034
    %v2203 = vpack.c.b16 %v2039, %v2035
    %v2204 = vpack.c.b16 %v2040, %v2036
    %v2205 = vpack.c.b16 %v2041, %v2037
    %v2206 = vpack.c.b16 %v2046, %v2042
    %v2207 = vpack.c.b16 %v2047, %v2043
    %v2208 = vpack.c.b16 %v2048, %v2044
    %v2209 = vpack.c.b16 %v2049, %v2045
    %v2210 = vpack.c.b16 %v2054, %v2050
    %v2211 = vpack.c.b16 %v2055, %v2051
    %v2212 = vpack.c.b16 %v2056, %v2052
    %v2213 = vpack.c.b16 %v2057, %v2053
    %v2214 = vpack.c.b16 %v2062, %v2058
    %v2215 = vpack.c.b16 %v2063, %v2059
    %v2216 = vpack.c.b16 %v2064, %v2060
    %v2217 = vpack.c.b16 %v2065, %v2061
    %v2218 = vpack.c.b16 %v2070, %v2066
    %v2219 = vpack.c.b16 %v2071, %v2067
    %v2220 = vpack.c.b16 %v2072, %v2068
    %v2221 = vpack.c.b16 %v2073, %v2069
    %v2222 = vpack.c.b16 %v2078, %v2074
    %v2223 = vpack.c.b16 %v2079, %v2075
    %v2224 = vpack.c.b16 %v2080, %v2076
    %v2225 = vpack.c.b16 %v2081, %v2077
    %v2226 = vpack.c.b16 %v2086, %v2082
    %v2227 = vpack.c.b16 %v2087, %v2083
    %v2228 = vpack.c.b16 %v2088, %v2084
    %v2229 = vpack.c.b16 %v2089, %v2085
    %v2230 = vpack.c.b16 %v2094, %v2090
    %v2231 = vpack.c.b16 %v2095, %v2091
    %v2232 = vpack.c.b16 %v2096, %v2092
    %v2233 = vpack.c.b16 %v2097, %v2093
    %v2234 = vpack.c.b16 %v2102, %v2098
    %v2235 = vpack.c.b16 %v2103, %v2099
    %v2236 = vpack.c.b16 %v2104, %v2100
    %v2237 = vpack.c.b16 %v2105, %v2101
    %v2238 = vpack.c.b16 %v2110, %v2106
    %v2239 = vpack.c.b16 %v2111, %v2107
    %v2240 = vpack.c.b16 %v2112, %v2108
    %v2241 = vpack.c.b16 %v2113, %v2109
    %2370 = vmatprep.subr.bf16.mxu0 %v2143
    %2371 = vmatpush1.bf16.msra.mxu0 %v2142
    %2372 = vmatprep.subr.bf16.mxu0 %v2139
    %2373 = vmatpush1.bf16.msra.mxu0 %v2138
    %2374 = vmatprep.subr.bf16.mxu0 %v2135
    %2375 = vmatpush1.bf16.msra.mxu0 %v2134
    %2376 = vmatprep.subr.bf16.mxu0 %v2131
    %2377 = vmatpush1.bf16.msra.mxu0 %v2130
    %2378 = vmatprep.subr.bf16.mxu0 %v2127
    %2379 = vmatpush1.bf16.msra.mxu0 %v2126
    %2380 = vmatprep.subr.bf16.mxu0 %v2123
    %2381 = vmatpush1.bf16.msra.mxu0 %v2122
    %2382 = vmatprep.subr.bf16.mxu0 %v2119
    %2383 = vmatpush1.bf16.msra.mxu0 %v2118
    %2384 = vmatprep.subr.bf16.mxu0 %v2115
    %2385 = vmatpush1.bf16.msra.mxu0 %v2114
    %2386 = vmatprep.subr.bf16.mxu0 %v2175
    %2387 = vmatpush2.bf16.msra.mxu0 %v2174
    %2388 = vmatprep.subr.bf16.mxu0 %v2171
    %2389 = vmatpush2.bf16.msra.mxu0 %v2170
    %2390 = vmatprep.subr.bf16.mxu0 %v2167
    %2391 = vmatpush2.bf16.msra.mxu0 %v2166
    %2392 = vmatprep.subr.bf16.mxu0 %v2163
    %2393 = vmatpush2.bf16.msra.mxu0 %v2162
    %2394 = vmatprep.subr.bf16.mxu0 %v2159
    %2395 = vmatpush2.bf16.msra.mxu0 %v2158
    %2396 = vmatprep.subr.bf16.mxu0 %v2155
    %2397 = vmatpush2.bf16.msra.mxu0 %v2154
    %2398 = vmatprep.subr.bf16.mxu0 %v2151
    %2399 = vmatpush2.bf16.msra.mxu0 %v2150
    %2400 = vmatprep.subr.bf16.mxu0 %v2147
    %2401 = vmatpush2.bf16.msra.mxu0 %v2146
    %2402 = vmatprep.mubr.bf16.mxu0 %v1577
    %2403 = vmatmul.mubr.bf16.gmra.mxu0 %v1576
    %v2404 = vpop.f32.mrf.mxu0
    %v2405 = vadd.f32 %v1713, %v2404
    %v2406 = vpop.f32.mrf.mxu0
    %v2407 = vadd.f32 %v1717, %v2406
    %v2408 = vpop.f32.mrf.mxu0
    %v2409 = vpop.f32.mrf.mxu0
    %2410 = vdwg.mxu0
    %2411 = vmatprep.subr.bf16.mxu0 %v2207
    %2412 = vmatpush1.bf16.msra.mxu0 %v2206
    %2413 = vmatprep.subr.bf16.mxu0 %v2203
    %2414 = vmatpush1.bf16.msra.mxu0 %v2202
    %2415 = vmatprep.subr.bf16.mxu0 %v2199
    %2416 = vmatpush1.bf16.msra.mxu0 %v2198
    %2417 = vmatprep.subr.bf16.mxu0 %v2195
    %2418 = vmatpush1.bf16.msra.mxu0 %v2194
    %2419 = vmatprep.subr.bf16.mxu0 %v2191
    %2420 = vmatpush1.bf16.msra.mxu0 %v2190
    %2421 = vmatprep.subr.bf16.mxu0 %v2187
    %2422 = vmatpush1.bf16.msra.mxu0 %v2186
    %2423 = vmatprep.subr.bf16.mxu0 %v2183
    %2424 = vmatpush1.bf16.msra.mxu0 %v2182
    %2425 = vmatprep.subr.bf16.mxu0 %v2179
    %2426 = vmatpush1.bf16.msra.mxu0 %v2178
    %2427 = vmatprep.subr.bf16.mxu0 %v2239
    %2428 = vmatpush2.bf16.msra.mxu0 %v2238
    %2429 = vmatprep.subr.bf16.mxu0 %v2235
    %2430 = vmatpush2.bf16.msra.mxu0 %v2234
    %2431 = vmatprep.subr.bf16.mxu0 %v2231
    %2432 = vmatpush2.bf16.msra.mxu0 %v2230
    %2433 = vmatprep.subr.bf16.mxu0 %v2227
    %2434 = vmatpush2.bf16.msra.mxu0 %v2226
    %2435 = vmatprep.subr.bf16.mxu0 %v2223
    %2436 = vmatpush2.bf16.msra.mxu0 %v2222
    %2437 = vmatprep.subr.bf16.mxu0 %v2219
    %2438 = vmatpush2.bf16.msra.mxu0 %v2218
    %2439 = vmatprep.subr.bf16.mxu0 %v2215
    %2440 = vmatpush2.bf16.msra.mxu0 %v2214
    %2441 = vmatprep.subr.bf16.mxu0 %v2211
    %2442 = vmatpush2.bf16.msra.mxu0 %v2210
    %2443 = vmatprep.mubr.bf16.mxu0 %v1579
    %2444 = vmatmul.mubr.bf16.gmra.mxu0 %v1578
    %v2445 = vpop.f32.mrf.mxu0
    %v2446 = vadd.f32 %v2405, %v2445
    %v2447 = vpop.f32.mrf.mxu0
    %v2448 = vadd.f32 %v2407, %v2447
    %v2449 = vpop.f32.mrf.mxu0
    %v2450 = vpop.f32.mrf.mxu0
    %2451 = vdwg.mxu0
    %2452 = vmatprep.subr.bf16.mxu0 %v2145
    %2453 = vmatpush1.bf16.msra.mxu0 %v2144
    %2454 = vmatprep.subr.bf16.mxu0 %v2141
    %2455 = vmatpush1.bf16.msra.mxu0 %v2140
    %2456 = vmatprep.subr.bf16.mxu0 %v2137
    %2457 = vmatpush1.bf16.msra.mxu0 %v2136
    %2458 = vmatprep.subr.bf16.mxu0 %v2133
    %2459 = vmatpush1.bf16.msra.mxu0 %v2132
    %2460 = vmatprep.subr.bf16.mxu0 %v2129
    %2461 = vmatpush1.bf16.msra.mxu0 %v2128
    %2462 = vmatprep.subr.bf16.mxu0 %v2125
    %2463 = vmatpush1.bf16.msra.mxu0 %v2124
    %2464 = vmatprep.subr.bf16.mxu0 %v2121
    %2465 = vmatpush1.bf16.msra.mxu0 %v2120
    %2466 = vmatprep.subr.bf16.mxu0 %v2117
    %2467 = vmatpush1.bf16.msra.mxu0 %v2116
    %2468 = vmatprep.subr.bf16.mxu0 %v2177
    %2469 = vmatpush2.bf16.msra.mxu0 %v2176
    %2470 = vmatprep.subr.bf16.mxu0 %v2173
    %2471 = vmatpush2.bf16.msra.mxu0 %v2172
    %2472 = vmatprep.subr.bf16.mxu0 %v2169
    %2473 = vmatpush2.bf16.msra.mxu0 %v2168
    %2474 = vmatprep.subr.bf16.mxu0 %v2165
    %2475 = vmatpush2.bf16.msra.mxu0 %v2164
    %2476 = vmatprep.subr.bf16.mxu0 %v2161
    %2477 = vmatpush2.bf16.msra.mxu0 %v2160
    %2478 = vmatprep.subr.bf16.mxu0 %v2157
    %2479 = vmatpush2.bf16.msra.mxu0 %v2156
    %2480 = vmatprep.subr.bf16.mxu0 %v2153
    %2481 = vmatpush2.bf16.msra.mxu0 %v2152
    %2482 = vmatprep.subr.bf16.mxu0 %v2149
    %2483 = vmatpush2.bf16.msra.mxu0 %v2148
    %2484 = vmatprep.mubr.bf16.mxu0 %v1577
    %2485 = vmatmul.mubr.bf16.gmra.mxu0 %v1576
    %v2486 = vpop.f32.mrf.mxu0
    %v2487 = vadd.f32 %v1721, %v2486
    %v2488 = vpop.f32.mrf.mxu0
    %v2489 = vadd.f32 %v1725, %v2488
    %v2490 = vpop.f32.mrf.mxu0
    %v2491 = vpop.f32.mrf.mxu0
    %2492 = vdwg.mxu0
    %2493 = vmatprep.subr.bf16.mxu0 %v2209
    %2494 = vmatpush1.bf16.msra.mxu0 %v2208
    %2495 = vmatprep.subr.bf16.mxu0 %v2205
    %2496 = vmatpush1.bf16.msra.mxu0 %v2204
    %2497 = vmatprep.subr.bf16.mxu0 %v2201
    %2498 = vmatpush1.bf16.msra.mxu0 %v2200
    %2499 = vmatprep.subr.bf16.mxu0 %v2197
    %2500 = vmatpush1.bf16.msra.mxu0 %v2196
    %2501 = vmatprep.subr.bf16.mxu0 %v2193
    %2502 = vmatpush1.bf16.msra.mxu0 %v2192
    %2503 = vmatprep.subr.bf16.mxu0 %v2189
    %2504 = vmatpush1.bf16.msra.mxu0 %v2188
    %2505 = vmatprep.subr.bf16.mxu0 %v2185
    %2506 = vmatpush1.bf16.msra.mxu0 %v2184
    %2507 = vmatprep.subr.bf16.mxu0 %v2181
    %2508 = vmatpush1.bf16.msra.mxu0 %v2180
    %2509 = vmatprep.subr.bf16.mxu0 %v2241
    %2510 = vmatpush2.bf16.msra.mxu0 %v2240
    %2511 = vmatprep.subr.bf16.mxu0 %v2237
    %2512 = vmatpush2.bf16.msra.mxu0 %v2236
    %2513 = vmatprep.subr.bf16.mxu0 %v2233
    %2514 = vmatpush2.bf16.msra.mxu0 %v2232
    %2515 = vmatprep.subr.bf16.mxu0 %v2229
    %2516 = vmatpush2.bf16.msra.mxu0 %v2228
    %2517 = vmatprep.subr.bf16.mxu0 %v2225
    %2518 = vmatpush2.bf16.msra.mxu0 %v2224
    %2519 = vmatprep.subr.bf16.mxu0 %v2221
    %2520 = vmatpush2.bf16.msra.mxu0 %v2220
    %2521 = vmatprep.subr.bf16.mxu0 %v2217
    %2522 = vmatpush2.bf16.msra.mxu0 %v2216
    %2523 = vmatprep.subr.bf16.mxu0 %v2213
    %2524 = vmatpush2.bf16.msra.mxu0 %v2212
    %2525 = vmatprep.mubr.bf16.mxu0 %v1579
    %2526 = vmatmul.mubr.bf16.gmra.mxu0 %v1578
    %v2527 = vpop.f32.mrf.mxu0
    %v2528 = vadd.f32 %v2487, %v2527
    %v2529 = vpop.f32.mrf.mxu0
    %v2530 = vadd.f32 %v2489, %v2529
    %v2531 = vpop.f32.mrf.mxu0
    %v2532 = vpop.f32.mrf.mxu0
    %2533 = vdwg.mxu0
    %vm2534 = vcmp.gt.f32.partialorder %v2446, 0.0
    %vm2535 = vcmp.gt.f32.partialorder %v2448, 0.0
    %vm2536 = vcmp.gt.f32.partialorder %v2528, 0.0
    %vm2537 = vcmp.gt.f32.partialorder %v2530, 0.0
    %v2538 = vmul.f32 %v2446, 0.2
    %v2539 = vmul.f32 %v2448, 0.2
    %v2540 = vmul.f32 %v2528, 0.2
    %v2541 = vmul.f32 %v2530, 0.2
    %v2542 = vsel %vm2534, %v2446, %v2538
    %v2543 = vsel %vm2535, %v2448, %v2539
    %v2544 = vsel %vm2536, %v2528, %v2540
    %v2545 = vsel %vm2537, %v2530, %v2541
    %v2546 = vld [vmem:[#allocation10] sm:$0xf]
    %v2548 = vlaneseq
    %v2549 = vshrl.u32 %v2548, 7
    %v2550 = vsub.s32 0, %v2549
    %v2551 = vrot.slane %v2546, %v2550
    %v2552 = vlaneseq
    %v2553 = vshrl.u32 %v2552, 7
    %v2554 = vsub.s32 1, %v2553
    %v2555 = vrot.slane %v2546, %v2554
    %v2556 = vlaneseq
    %v2557 = vshrl.u32 %v2556, 7
    %v2558 = vsub.s32 2, %v2557
    %v2559 = vrot.slane %v2546, %v2558
    %v2560 = vlaneseq
    %v2561 = vshrl.u32 %v2560, 7
    %v2562 = vsub.s32 3, %v2561
    %v2563 = vrot.slane %v2546, %v2562
    %v2568 = vmul.f32 %v2542, %v2551
    %v2569 = vmul.f32 %v2543, %v2555
    %v2570 = vmul.f32 %v2544, %v2559
    %v2571 = vmul.f32 %v2545, %v2563
    %v2572 = vadd.f32 %v2568, %v2569
    %v2573 = vadd.f32 %v2572, %v2570
    %v2574 = vadd.f32 %v2573, %v2571
    %2575 = vadd.xlane.f32.xlu0 %v2574
    %v2576 = vpop.xlane.xlu0 %2575
    %v2577 = vld [vmem:[#allocation2] sm:$0x1]
    %v2579 = vlaneseq
    %v2580 = vshrl.u32 %v2579, 7
    %v2581 = vsub.s32 0, %v2580
    %v2582 = vrot.slane %v2577, %v2581
    %v2584 = vadd.f32 %v2576, %v2582
    %v2585 = vxor.u32 %v2584, 2147483648
    %v2586 = vmul.f32 %v2585, 1.442695
    %v2587 = vpow.pop %v2586
    %v2588 = vadd.f32 %v2587, 1.0
    %v2589 = vrcp.pop %v2588
    %v2590 = vmul.f32 1.0, %v2589
    %vm2591 = vcmask 7168
    %2592 = vst.msk [vmem:[%s9] sm:$0xff] %vm2591, %v2590
    // Predicated region
    $region58: #{tpu_custom_call.1} parent=1 // pred_check
      _
    $region59: #{tpu_custom_call.1} parent=1 // pred_check_branch
      %2594 = sbr.rel (0) target = $region61
    $region60: #{tpu_custom_call.1} parent=1 // pred_region
      _
    $region61: #{tpu_custom_call.1} parent=1 // pred_fallthru
      _
    // Predicated region
    $region62: #{tpu_custom_call.1} parent=1 // pred_check
      _
    $region63: #{tpu_custom_call.1} parent=1 // pred_check_branch
      %2596 = sbr.rel (0) target = $region65
    $region64: #{tpu_custom_call.1} parent=1 // pred_region
      _
    $region65: #{tpu_custom_call.1} parent=1 // pred_fallthru
      _
    %2597 = vsyncpa [#allocation4], 1
    %2598 = vsyncpa [#allocation6], 1
    %2599 = vsyncpa [#allocation9], 1

</llo_original>
